<compile_context>
chip_gen: v7x
topology: tpu7x:2x2x1
jax: 0.10.0
libtpu: 0.0.40
codegen_flags: <defaults>
</compile_context>

<pallas_src>
import math
import numpy as np
import jax
import jax.numpy as jnp
from jax.experimental import pallas as pl
from jax.experimental.pallas import tpu as pltpu


# ---------------------------------------------------------------------------
# Pallas kernel 1: single-layer LSTM over a padded, length-masked sequence.
# ---------------------------------------------------------------------------
def _make_lstm_kernel(num_x, with_skip):
    """num_x input streams (each with its own (I_k, 4H) weight); optional fused
    residual (out + x) at the output store."""

    def kernel(*refs):
        idx = 0
        x_refs = refs[idx:idx + num_x]; idx += num_x
        wih_refs = refs[idx:idx + num_x]; idx += num_x
        h0_ref, c0_ref, whh_ref, b_ref, len_ref = refs[idx:idx + 5]; idx += 5
        out_ref, hN_ref, cN_ref = refs[idx:idx + 3]; idx += 3
        h_scr, c_scr, xw_scr = refs[idx:idx + 3]

        T, B, H = out_ref.shape          # B  = real batch
        Bp = h0_ref.shape[0]             # Bp = batch padded to sublane granularity
        f32 = jnp.float32
        bf16 = jnp.bfloat16

        # (1) Hoisted input projection: one (T*Bp, I) x (I, 4H) MXU matmul per
        #     input stream, bf16 MXU inputs, f32 accumulation, bias added once.
        acc = jnp.dot(x_refs[0][...].astype(bf16), wih_refs[0][...].astype(bf16),
                      preferred_element_type=f32)
        for k in range(1, num_x):
            acc = acc + jnp.dot(x_refs[k][...].astype(bf16),
                                wih_refs[k][...].astype(bf16),
                                preferred_element_type=f32)
        xw_scr[...] = acc + b_ref[...]                      # (T*Bp, 4H)

        # Hoisted loop-invariants.
        whh = whh_ref[...]               # recurrent matmul kept f32 (accuracy / v5e)
        lens = len_ref[...]              # (Bp, 1) int32, loaded once
        h_scr[...] = h0_ref[...]
        c_scr[...] = c0_ref[...]

        # Single-sigmoid gate trick: scale the g-gate lanes by 2, sigmoid the
        # whole (Bp, 4H) vreg once, recover tanh via tanh(x) = 2*sigmoid(2x)-1.
        lane = jax.lax.broadcasted_iota(jnp.int32, (Bp, 4 * H), 1)
        gate_scale = jnp.where((lane >= 2 * H) & (lane < 3 * H), 2.0, 1.0).astype(f32)

        def step(t, carry):
            row = pl.multiple_of(t * Bp, Bp)                # aligned sublane window
            h_prev = h_scr[...]
            c_prev = c_scr[...]
            g = xw_scr[pl.ds(row, Bp), :] + jnp.dot(h_prev, whh,
                                                    preferred_element_type=f32)
            s = jax.nn.sigmoid(g * gate_scale)              # one full-vreg EUP push
            i_g = s[:, 0:H]
            f_g = s[:, H:2 * H]
            g_g = 2.0 * s[:, 2 * H:3 * H] - 1.0             # == tanh(pre-activation)
            o_g = s[:, 3 * H:4 * H]
            c_new = f_g * c_prev + i_g * g_g
            h_new = o_g * jnp.tanh(c_new)
            valid = lens > t                                # (Bp, 1) bool
            h_scr[...] = jnp.where(valid, h_new, h_prev)
            c_scr[...] = jnp.where(valid, c_new, c_prev)
            out_t = jnp.where(valid, h_new, 0.0)
            if with_skip:                                   # fused residual
                out_t = out_t + x_refs[0][pl.ds(row, Bp), :]
            out_ref[pl.ds(t, 1)] = out_t[0:B, :][None]      # store real rows only
            return carry

        jax.lax.fori_loop(0, T, step, 0, unroll=True)       # short, fixed trip count
        hN_ref[...] = h_scr[0:B, :]
        cN_ref[...] = c_scr[0:B, :]

    return kernel


def lstm_forward(xs, h0, c0, w_ihs, w_hh, b, lens, *, with_skip):
    """xs: list of (T, B, I_k) time-major inputs; w_ihs: list of (I_k, 4H)."""
    T, B, _ = xs[0].shape
    H = h0.shape[-1]
    Bp = ((B + 7) // 8) * 8                                  # pad batch to sublanes

    xs2d = [jnp.pad(x, ((0, 0), (0, Bp - B), (0, 0))).reshape(T * Bp, x.shape[-1])
            for x in xs]
    h0p = jnp.pad(h0, ((0, Bp - B), (0, 0)))
    c0p = jnp.pad(c0, ((0, Bp - B), (0, 0)))
    lensp = jnp.pad(lens, ((0, Bp - B), (0, 0)))             # padded rows: length 0

    vmem = lambda: pl.BlockSpec(memory_space=pltpu.MemorySpace.VMEM)
    n_in = 2 * len(xs) + 5
    out, hN, cN = pl.pallas_call(
        _make_lstm_kernel(len(xs), with_skip),
        out_shape=(jax.ShapeDtypeStruct((T, B, H), jnp.float32),
                   jax.ShapeDtypeStruct((B, H), jnp.float32),
                   jax.ShapeDtypeStruct((B, H), jnp.float32)),
        in_specs=[vmem() for _ in range(n_in)],
        out_specs=(vmem(), vmem(), vmem()),
        scratch_shapes=[pltpu.VMEM((Bp, H), jnp.float32),
                        pltpu.VMEM((Bp, H), jnp.float32),
                        pltpu.VMEM((T * Bp, 4 * H), jnp.float32)],
    )(*xs2d, *w_ihs, h0p, c0p, w_hh, b, lensp)
    return out, hN, cN


# ---------------------------------------------------------------------------
# Pallas kernel 2a: batched Q/K/V projections for one attention head
# (all of (time, batch) folded into MXU rows, bf16 MXU inputs).
# ---------------------------------------------------------------------------
def _attn_proj_kernel(q_ref, k_ref, wq_ref, bq_ref, wk_ref, bk_ref,
                      wv_ref, bv_ref, qp_ref, kp_ref, vp_ref):
    f32 = jnp.float32
    bf16 = jnp.bfloat16
    q2 = q_ref[...].astype(bf16)
    k2 = k_ref[...].astype(bf16)
    qp_ref[...] = jnp.dot(q2, wq_ref[...].astype(bf16),
                          preferred_element_type=f32) + bq_ref[...]
    kp_ref[...] = jnp.dot(k2, wk_ref[...].astype(bf16),
                          preferred_element_type=f32) + bk_ref[...]
    vp_ref[...] = jnp.dot(k2, wv_ref[...].astype(bf16),
                          preferred_element_type=f32) + bv_ref[...]


# ---------------------------------------------------------------------------
# Pallas kernel 2b: additive-attention core, fully vectorized over
# (query time, encoder time, batch); single bulk store of the context.
# ---------------------------------------------------------------------------
def _attn_core_kernel(qp_ref, kp_ref, vp_ref, m_ref, w_ref, bw_ref, out_ref):
    # qp: (Tq, B, H)   kp, vp: (Te, B, H)   m: (Te, B) float {0,1}
    s = jnp.tanh(qp_ref[...][:, None, :, :] + kp_ref[...][None, :, :, :])  # (Tq,Te,B,H)
    w_row = w_ref[...][None, None]                                         # (1,1,1,H)
    # Scores via VPU multiply + lane reduce over H (no N=1 MXU dots, no Tq loop).
    sc = jnp.sum(s * w_row, axis=-1) + bw_ref[...][None]                   # (Tq,Te,B)
    sc = jnp.where(m_ref[...][None] > 0.5, sc, jnp.float32(-1000000.0))
    sc = sc - jnp.max(sc, axis=1, keepdims=True)                           # softmax(Te)
    e = jnp.exp(sc)
    attn = e * pl.reciprocal(jnp.sum(e, axis=1, keepdims=True), approx=True)
    out_ref[...] = jnp.sum(attn[..., None] * vp_ref[...][None], axis=1)    # (Tq,B,H)


def attn_forward(q_tbh, k_tbh, mask_tb, p):
    """q: (Tq,B,H), k: (Te,B,H) time-major; mask: (Te,B) float. Returns (Tq,B,H)."""
    Tq, B, H = q_tbh.shape
    Te = k_tbh.shape[0]
    vmem = lambda: pl.BlockSpec(memory_space=pltpu.MemorySpace.VMEM)

    qp2, kp2, vp2 = pl.pallas_call(
        _attn_proj_kernel,
        out_shape=(jax.ShapeDtypeStruct((Tq * B, H), jnp.float32),
                   jax.ShapeDtypeStruct((Te * B, H), jnp.float32),
                   jax.ShapeDtypeStruct((Te * B, H), jnp.float32)),
        in_specs=[vmem() for _ in range(8)],
        out_specs=(vmem(), vmem(), vmem()),
    )(q_tbh.reshape(Tq * B, H), k_tbh.reshape(Te * B, H),
      p["wq"], p["bq"], p["wk"], p["bk"], p["wv"], p["bv"])

    ctx = pl.pallas_call(
        _attn_core_kernel,
        out_shape=jax.ShapeDtypeStruct((Tq, B, H), jnp.float32),
        in_specs=[vmem() for _ in range(6)],
        out_specs=vmem(),
    )(qp2.reshape(Tq, B, H), kp2.reshape(Te, B, H), vp2.reshape(Te, B, H),
      mask_tb, p["w"], p["bw"])
    return ctx


# ---------------------------------------------------------------------------
# Decoder.forward, driving the Pallas kernels (time-major throughout).
# ---------------------------------------------------------------------------
def decoder_forward(params, inputs_padded, input_lens, l_states,
                    enc1_padded, enc1_lens, enc2_padded, enc2_lens, num_layer):
    lens = jnp.asarray(input_lens, jnp.int32).reshape(-1, 1)
    tensor = inputs_padded                                   # (T, B, H) time-major
    new_states = []
    for i in range(num_layer - 1):
        p = params["layers"][i]
        h0, c0 = l_states[i]
        out, hN, cN = lstm_forward([tensor], h0[0], c0[0], [p["w_ih"]],
                                   p["w_hh"], p["b"], lens, with_skip=True)
        new_states.append((hN[None], cN[None]))
        tensor = out                                         # residual fused in-kernel

    def make_mask_tb(lengths, Te):
        pos = jnp.arange(Te)[:, None]                        # (Te, 1)
        return (pos < jnp.asarray(lengths)[None, :]).astype(jnp.float32)  # (Te, B)

    ctx1 = attn_forward(tensor, enc1_padded,
                        make_mask_tb(enc1_lens, enc1_padded.shape[0]), params["attn1"])
    ctx2 = attn_forward(tensor, enc2_padded,
                        make_mask_tb(enc2_lens, enc2_padded.shape[0]), params["attn2"])
    context = ctx1 + ctx2                                    # (T, B, H)

    # Final LSTM: no concat — W_ih is split into two (H,4H) blocks and the two
    # input projections are summed inside the kernel.
    p = params["rnn"]
    H = tensor.shape[-1]
    h0, c0 = l_states[-1]
    out, hN, cN = lstm_forward([tensor, context], h0[0], c0[0],
                               [p["w_ih"][:H], p["w_ih"][H:]],
                               p["w_hh"], p["b"], lens, with_skip=False)
    new_states.append((hN[None], cN[None]))
    return out, new_states


# ---------------------------------------------------------------------------
# Pure-JAX f32 reference (mirrors the PyTorch module) for verification.
# ---------------------------------------------------------------------------
def _lstm_ref(x, h0, c0, w_ih, w_hh, b, lens):
    T, B, _ = x.shape
    H = h0.shape[-1]
    h, c = h0, c0
    outs = []
    for t in range(T):
        gates = x[t] @ w_ih + h @ w_hh + b
        i_g = jax.nn.sigmoid(gates[:, :H]); f_g = jax.nn.sigmoid(gates[:, H:2 * H])
        g_g = jnp.tanh(gates[:, 2 * H:3 * H]); o_g = jax.nn.sigmoid(gates[:, 3 * H:])
        c_new = f_g * c + i_g * g_g
        h_new = o_g * jnp.tanh(c_new)
        valid = lens > t
        h = jnp.where(valid, h_new, h)
        c = jnp.where(valid, c_new, c)
        outs.append(jnp.where(valid, h_new, 0.0))
    return jnp.stack(outs), h, c


def _attn_ref(q_tbh, k_tbh, mask_1tb, p):
    qp = q_tbh @ p["wq"] + p["bq"][0]
    kp = k_tbh @ p["wk"] + p["bk"][0]
    vp = k_tbh @ p["wv"] + p["bv"][0]
    s = jnp.tanh(qp[:, None] + kp[None])                     # (Tq, Te, B, H)
    sc = (s * p["w"][0]).sum(-1) + p["bw"][0, 0]             # (Tq, Te, B)
    sc = jnp.where(mask_1tb, sc, jnp.float32(-1000000.0))
    a = jax.nn.softmax(sc, axis=1)
    return (a[..., None] * vp[None]).sum(axis=1)             # (Tq, B, H)


def decoder_forward_ref(params, inputs_padded, input_lens, l_states,
                        enc1_padded, enc1_lens, enc2_padded, enc2_lens, num_layer):
    lens = jnp.asarray(input_lens, jnp.int32).reshape(-1, 1)
    tensor = inputs_padded
    new_states = []
    for i in range(num_layer - 1):
        skip = tensor
        p = params["layers"][i]
        h0, c0 = l_states[i]
        out, hN, cN = _lstm_ref(tensor, h0[0], c0[0], p["w_ih"], p["w_hh"], p["b"], lens)
        new_states.append((hN[None], cN[None]))
        tensor = out + skip
    Te1, Te2 = enc1_padded.shape[0], enc2_padded.shape[0]
    m1 = (jnp.arange(Te1)[:, None] < jnp.asarray(enc1_lens)[None, :])[None]
    m2 = (jnp.arange(Te2)[:, None] < jnp.asarray(enc2_lens)[None, :])[None]
    c1 = _attn_ref(tensor, enc1_padded, m1, params["attn1"])
    c2 = _attn_ref(tensor, enc2_padded, m2, params["attn2"])
    tensor = jnp.concatenate([tensor, c1 + c2], axis=-1)
    p = params["rnn"]
    h0, c0 = l_states[-1]
    out, hN, cN = _lstm_ref(tensor, h0[0], c0[0], p["w_ih"], p["w_hh"], p["b"], lens)
    new_states.append((hN[None], cN[None]))
    return out, new_states


# ---------------------------------------------------------------------------
# Deterministic parameter / input construction.
# ---------------------------------------------------------------------------
def _uniform(key, shape, bound):
    return jax.random.uniform(key, shape, jnp.float32, -bound, bound)


def init_lstm_params(key, in_size, hidden):
    k = 1.0 / math.sqrt(hidden)
    k0, k1, k2, k3 = jax.random.split(key, 4)
    return {"w_ih": _uniform(k0, (in_size, 4 * hidden), k),
            "w_hh": _uniform(k1, (hidden, 4 * hidden), k),
            "b": (_uniform(k2, (4 * hidden,), k)
                  + _uniform(k3, (4 * hidden,), k)).reshape(1, 4 * hidden)}


def _init_linear(key, in_f, out_f):
    k = 1.0 / math.sqrt(in_f)
    k0, k1 = jax.random.split(key)
    return _uniform(k0, (in_f, out_f), k), _uniform(k1, (1, out_f), k)


def init_attn_params(key, enc_size, attn_size):
    kq, kk, kv, kw = jax.random.split(key, 4)
    wq, bq = _init_linear(kq, enc_size, attn_size)
    wk, bk = _init_linear(kk, enc_size, attn_size)
    wv, bv = _init_linear(kv, enc_size, attn_size)
    w, bw = _init_linear(kw, attn_size, 1)
    # Score weight stored as (1, ATTN_SIZE) so the kernel can lane-broadcast it.
    return {"wq": wq, "bq": bq, "wk": wk, "bk": bk, "wv": wv, "bv": bv,
            "w": jnp.transpose(w), "bw": bw}


def pad_sequence(seqs, total_len):
    B = len(seqs)
    H = seqs[0].shape[-1]
    out = jnp.zeros((total_len, B, H), jnp.float32)
    for b, s in enumerate(seqs):
        out = out.at[:s.shape[0], b, :].set(s)
    return out


if __name__ == "__main__":
    # config: ENC_SIZE == ATTN_SIZE == DEC_SIZE == H (required by the module's
    # cat([tensor, context]) feeding nn.LSTM(2*DEC_SIZE, DEC_SIZE)).
    H = 32
    NUM_LAYER = 3
    B = 2
    input_lens = [8, 5]
    enc1_lens = [6, 4]
    enc2_lens = [7, 5]

    key = jax.random.PRNGKey(0)
    keys = jax.random.split(key, 16)

    params = {
        "layers": [init_lstm_params(keys[i], H, H) for i in range(NUM_LAYER - 1)],
        "rnn": init_lstm_params(keys[4], 2 * H, H),
        "attn1": init_attn_params(keys[5], H, H),
        "attn2": init_attn_params(keys[6], H, H),
    }

    inputs_list = [0.5 * jax.random.normal(keys[7 + b], (input_lens[b], H), jnp.float32)
                   for b in range(B)]
    enc1_list = [0.5 * jax.random.normal(keys[9 + b], (enc1_lens[b], H), jnp.float32)
                 for b in range(B)]
    enc2_list = [0.5 * jax.random.normal(keys[11 + b], (enc2_lens[b], H), jnp.float32)
                 for b in range(B)]
    inputs_padded = pad_sequence(inputs_list, max(input_lens))
    enc1_padded = pad_sequence(enc1_list, max(enc1_lens))
    enc2_padded = pad_sequence(enc2_list, max(enc2_lens))

    # l_states: NUM_LAYER tuples of (h, c), each (1, B, H).
    sk = jax.random.split(keys[13], 2 * NUM_LAYER)
    l_states = [(0.2 * jax.random.normal(sk[2 * i], (1, B, H), jnp.float32),
                 0.2 * jax.random.normal(sk[2 * i + 1], (1, B, H), jnp.float32))
                for i in range(NUM_LAYER)]

    out, new_states = decoder_forward(params, inputs_padded, input_lens, l_states,
                                      enc1_padded, enc1_lens,
                                      enc2_padded, enc2_lens, NUM_LAYER)
    out = jax.block_until_ready(out)
    new_states = jax.tree_util.tree_map(jax.block_until_ready, new_states)

    # Verify against the pure-JAX f32 reference mirroring the PyTorch module.
    # Tolerance allows for bf16 MXU inputs (f32 accumulation) in the kernels.
    out_ref, states_ref = decoder_forward_ref(params, inputs_padded, input_lens,
                                              l_states, enc1_padded, enc1_lens,
                                              enc2_padded, enc2_lens, NUM_LAYER)
    ATOL = RTOL = 4e-2
    assert out.shape == (max(input_lens), B, H)
    assert np.allclose(np.asarray(out), np.asarray(out_ref), atol=ATOL, rtol=RTOL)
    for (h_p, c_p), (h_r, c_r) in zip(new_states, states_ref):
        assert np.allclose(np.asarray(h_p), np.asarray(h_r), atol=ATOL, rtol=RTOL)
        assert np.allclose(np.asarray(c_p), np.asarray(c_r), atol=ATOL, rtol=RTOL)

    print("KERNEL_OK")
</pallas_src>

<mosaic_0001>
module attributes {stable_mosaic.version = 11 : i64} {
  func.func @kernel(%arg0: memref<64x32xf32, #tpu.memory_space<vmem>>, %arg1: memref<32x128xf32, #tpu.memory_space<vmem>>, %arg2: memref<8x32xf32, #tpu.memory_space<vmem>>, %arg3: memref<8x32xf32, #tpu.memory_space<vmem>>, %arg4: memref<32x128xf32, #tpu.memory_space<vmem>>, %arg5: memref<1x128xf32, #tpu.memory_space<vmem>>, %arg6: memref<8x1xi32, #tpu.memory_space<vmem>>, %arg7: memref<8x2x32xf32, #tpu.memory_space<vmem>>, %arg8: memref<2x32xf32, #tpu.memory_space<vmem>>, %arg9: memref<2x32xf32, #tpu.memory_space<vmem>>, %arg10: memref<8x32xf32, #tpu.memory_space<vmem>>, %arg11: memref<8x32xf32, #tpu.memory_space<vmem>>, %arg12: memref<64x128xf32, #tpu.memory_space<vmem>>) attributes {dimension_semantics = [], scalar_prefetch = 0 : i64, scratch_operands = 3 : i64, tpu.core_type = #tpu.core_type<tc>} {
    %c0 = arith.constant 0 : index
    %c0_0 = arith.constant 0 : index
    %0 = vector.load %arg0[%c0, %c0_0] : memref<64x32xf32, #tpu.memory_space<vmem>>, vector<64x32xf32>
    %1 = arith.truncf %0 : vector<64x32xf32> to vector<64x32xbf16>
    %c0_1 = arith.constant 0 : index
    %c0_2 = arith.constant 0 : index
    %2 = vector.load %arg1[%c0_1, %c0_2] : memref<32x128xf32, #tpu.memory_space<vmem>>, vector<32x128xf32>
    %3 = arith.truncf %2 : vector<32x128xf32> to vector<32x128xbf16>
    %cst = arith.constant dense<0.000000e+00> : vector<64x128xf32>
    %4 = tpu.matmul %1, %3, %cst {dimension_numbers = #tpu.dot_dimension_numbers<[1], [0], [0], [1], [0, 0, 1, 1], [], []>} : vector<64x32xbf16>, vector<32x128xbf16>, vector<64x128xf32> -> vector<64x128xf32>
    %c0_3 = arith.constant 0 : index
    %c0_4 = arith.constant 0 : index
    %5 = vector.load %arg5[%c0_3, %c0_4] : memref<1x128xf32, #tpu.memory_space<vmem>>, vector<1x128xf32>
    %6 = vector.broadcast %5 : vector<1x128xf32> to vector<64x128xf32>
    %7 = arith.addf %4, %6 : vector<64x128xf32>
    %c0_5 = arith.constant 0 : index
    %c0_6 = arith.constant 0 : index
    %8 = vector.load %arg12[%c0_5, %c0_6] : memref<64x128xf32, #tpu.memory_space<vmem>>, vector<64x128xf32>
    tpu.vector_store %arg12[%c0_5, %c0_6], %7 {strides = array<i32>} : memref<64x128xf32, #tpu.memory_space<vmem>>, vector<64x128xf32>,
    %c0_7 = arith.constant 0 : index
    %c0_8 = arith.constant 0 : index
    %9 = vector.load %arg4[%c0_7, %c0_8] : memref<32x128xf32, #tpu.memory_space<vmem>>, vector<32x128xf32>
    %c0_9 = arith.constant 0 : index
    %c0_10 = arith.constant 0 : index
    %10 = vector.load %arg6[%c0_9, %c0_10] : memref<8x1xi32, #tpu.memory_space<vmem>>, vector<8x1xi32>
    %c0_11 = arith.constant 0 : index
    %c0_12 = arith.constant 0 : index
    %11 = vector.load %arg2[%c0_11, %c0_12] : memref<8x32xf32, #tpu.memory_space<vmem>>, vector<8x32xf32>
    %c0_13 = arith.constant 0 : index
    %c0_14 = arith.constant 0 : index
    %12 = vector.load %arg10[%c0_13, %c0_14] : memref<8x32xf32, #tpu.memory_space<vmem>>, vector<8x32xf32>
    tpu.vector_store %arg10[%c0_13, %c0_14], %11 {strides = array<i32>} : memref<8x32xf32, #tpu.memory_space<vmem>>, vector<8x32xf32>,
    %c0_15 = arith.constant 0 : index
    %c0_16 = arith.constant 0 : index
    %13 = vector.load %arg3[%c0_15, %c0_16] : memref<8x32xf32, #tpu.memory_space<vmem>>, vector<8x32xf32>
    %c0_17 = arith.constant 0 : index
    %c0_18 = arith.constant 0 : index
    %14 = vector.load %arg11[%c0_17, %c0_18] : memref<8x32xf32, #tpu.memory_space<vmem>>, vector<8x32xf32>
    tpu.vector_store %arg11[%c0_17, %c0_18], %13 {strides = array<i32>} : memref<8x32xf32, #tpu.memory_space<vmem>>, vector<8x32xf32>,
    %15 = tpu.iota {dimensions = array<i32: 1>} : vector<8x128xi32>
    %c64_i32 = arith.constant 64 : i32
    %16 = vector.broadcast %c64_i32 : i32 to vector<8x128xi32>
    %17 = arith.cmpi sge, %15, %16 : vector<8x128xi32>
    %c96_i32 = arith.constant 96 : i32
    %18 = vector.broadcast %c96_i32 : i32 to vector<8x128xi32>
    %19 = arith.cmpi slt, %15, %18 : vector<8x128xi32>
    %20 = arith.andi %17, %19 : vector<8x128xi1>
    %cst_19 = arith.constant 2.000000e+00 : f32
    %cst_20 = arith.constant 1.000000e+00 : f32
    %21 = vector.broadcast %cst_19 : f32 to vector<8x128xf32>
    %22 = vector.broadcast %cst_20 : f32 to vector<8x128xf32>
    %23 = arith.select %20, %21, %22 : vector<8x128xi1>, vector<8x128xf32>
    %c0_i32 = arith.constant 0 : i32
    %c8_i32 = arith.constant 8 : i32
    %24 = arith.muli %c0_i32, %c8_i32 : i32
    %25 = tpu.assume_multiple %24, 8 : i32
    %c0_21 = arith.constant 0 : index
    %c0_22 = arith.constant 0 : index
    %26 = vector.load %arg10[%c0_21, %c0_22] : memref<8x32xf32, #tpu.memory_space<vmem>>, vector<8x32xf32>
    %c0_23 = arith.constant 0 : index
    %c0_24 = arith.constant 0 : index
    %27 = vector.load %arg11[%c0_23, %c0_24] : memref<8x32xf32, #tpu.memory_space<vmem>>, vector<8x32xf32>
    %28 = arith.index_cast %25 : i32 to index
    %c0_25 = arith.constant 0 : index
    %29 = vector.load %arg12[%28, %c0_25] : memref<64x128xf32, #tpu.memory_space<vmem>>, vector<8x128xf32>
    %cst_26 = arith.constant dense<0.000000e+00> : vector<8x128xf32>
    %30 = tpu.matmul %26, %9, %cst_26 {dimension_numbers = #tpu.dot_dimension_numbers<[1], [0], [0], [1], [0, 0, 1, 1], [], []>} : vector<8x32xf32>, vector<32x128xf32>, vector<8x128xf32> -> vector<8x128xf32>
    %31 = arith.addf %29, %30 : vector<8x128xf32>
    %32 = arith.mulf %31, %23 : vector<8x128xf32>
    %33 = arith.negf %32 : vector<8x128xf32>
    %34 = math.exp %33 : vector<8x128xf32>
    %cst_27 = arith.constant 1.000000e+00 : f32
    %35 = vector.broadcast %cst_27 : f32 to vector<8x128xf32>
    %36 = arith.addf %35, %34 : vector<8x128xf32>
    %37 = arith.divf %35, %36 : vector<8x128xf32>
    %38 = vector.extract_strided_slice %37 {offsets = [0, 0], sizes = [8, 32], strides = [1, 1]} : vector<8x128xf32> to vector<8x32xf32>
    %39 = vector.extract_strided_slice %37 {offsets = [0, 32], sizes = [8, 32], strides = [1, 1]} : vector<8x128xf32> to vector<8x32xf32>
    %40 = vector.extract_strided_slice %37 {offsets = [0, 64], sizes = [8, 32], strides = [1, 1]} : vector<8x128xf32> to vector<8x32xf32>
    %cst_28 = arith.constant 2.000000e+00 : f32
    %41 = vector.broadcast %cst_28 : f32 to vector<8x32xf32>
    %42 = arith.mulf %41, %40 : vector<8x32xf32>
    %cst_29 = arith.constant 1.000000e+00 : f32
    %43 = vector.broadcast %cst_29 : f32 to vector<8x32xf32>
    %44 = arith.subf %42, %43 : vector<8x32xf32>
    %45 = vector.extract_strided_slice %37 {offsets = [0, 96], sizes = [8, 32], strides = [1, 1]} : vector<8x128xf32> to vector<8x32xf32>
    %46 = arith.mulf %39, %27 : vector<8x32xf32>
    %47 = arith.mulf %38, %44 : vector<8x32xf32>
    %48 = arith.addf %46, %47 : vector<8x32xf32>
    %49 = math.tanh %48 : vector<8x32xf32>
    %50 = arith.mulf %45, %49 : vector<8x32xf32>
    %51 = vector.broadcast %c0_i32 : i32 to vector<8x1xi32>
    %52 = arith.cmpi sgt, %10, %51 : vector<8x1xi32>
    %53 = vector.shape_cast %52 : vector<8x1xi1> to vector<8x1xi1>
    %54 = vector.broadcast %53 : vector<8x1xi1> to vector<8x32xi1>
    %55 = arith.select %54, %50, %26 : vector<8x32xi1>, vector<8x32xf32>
    %c0_30 = arith.constant 0 : index
    %c0_31 = arith.constant 0 : index
    %56 = vector.load %arg10[%c0_30, %c0_31] : memref<8x32xf32, #tpu.memory_space<vmem>>, vector<8x32xf32>
    tpu.vector_store %arg10[%c0_30, %c0_31], %55 {strides = array<i32>} : memref<8x32xf32, #tpu.memory_space<vmem>>, vector<8x32xf32>,
    %57 = vector.shape_cast %52 : vector<8x1xi1> to vector<8x1xi1>
    %58 = vector.broadcast %57 : vector<8x1xi1> to vector<8x32xi1>
    %59 = arith.select %58, %48, %27 : vector<8x32xi1>, vector<8x32xf32>
    %c0_32 = arith.constant 0 : index
    %c0_33 = arith.constant 0 : index
    %60 = vector.load %arg11[%c0_32, %c0_33] : memref<8x32xf32, #tpu.memory_space<vmem>>, vector<8x32xf32>
    tpu.vector_store %arg11[%c0_32, %c0_33], %59 {strides = array<i32>} : memref<8x32xf32, #tpu.memory_space<vmem>>, vector<8x32xf32>,
    %cst_34 = arith.constant 0.000000e+00 : f32
    %61 = vector.shape_cast %52 : vector<8x1xi1> to vector<8x1xi1>
    %62 = vector.broadcast %61 : vector<8x1xi1> to vector<8x32xi1>
    %63 = vector.broadcast %cst_34 : f32 to vector<8x32xf32>
    %64 = arith.select %62, %50, %63 : vector<8x32xi1>, vector<8x32xf32>
    %65 = arith.index_cast %25 : i32 to index
    %c0_35 = arith.constant 0 : index
    %66 = vector.load %arg0[%65, %c0_35] : memref<64x32xf32, #tpu.memory_space<vmem>>, vector<8x32xf32>
    %67 = arith.addf %64, %66 : vector<8x32xf32>
    %68 = vector.extract_strided_slice %67 {offsets = [0, 0], sizes = [2, 32], strides = [1, 1]} : vector<8x32xf32> to vector<2x32xf32>
    %69 = vector.shape_cast %68 : vector<2x32xf32> to vector<1x2x32xf32>
    %70 = arith.index_cast %c0_i32 : i32 to index
    %c0_36 = arith.constant 0 : index
    %c0_37 = arith.constant 0 : index
    %71 = vector.load %arg7[%70, %c0_36, %c0_37] : memref<8x2x32xf32, #tpu.memory_space<vmem>>, vector<1x2x32xf32>
    tpu.vector_store %arg7[%70, %c0_36, %c0_37], %69 {strides = array<i32>} : memref<8x2x32xf32, #tpu.memory_space<vmem>>, vector<1x2x32xf32>,
    %c1_i32 = arith.constant 1 : i32
    %c8_i32_38 = arith.constant 8 : i32
    %72 = arith.muli %c1_i32, %c8_i32_38 : i32
    %73 = tpu.assume_multiple %72, 8 : i32
    %c0_39 = arith.constant 0 : index
    %c0_40 = arith.constant 0 : index
    %74 = vector.load %arg10[%c0_39, %c0_40] : memref<8x32xf32, #tpu.memory_space<vmem>>, vector<8x32xf32>
    %c0_41 = arith.constant 0 : index
    %c0_42 = arith.constant 0 : index
    %75 = vector.load %arg11[%c0_41, %c0_42] : memref<8x32xf32, #tpu.memory_space<vmem>>, vector<8x32xf32>
    %76 = arith.index_cast %73 : i32 to index
    %c0_43 = arith.constant 0 : index
    %77 = vector.load %arg12[%76, %c0_43] : memref<64x128xf32, #tpu.memory_space<vmem>>, vector<8x128xf32>
    %cst_44 = arith.constant dense<0.000000e+00> : vector<8x128xf32>
    %78 = tpu.matmul %74, %9, %cst_44 {dimension_numbers = #tpu.dot_dimension_numbers<[1], [0], [0], [1], [0, 0, 1, 1], [], []>} : vector<8x32xf32>, vector<32x128xf32>, vector<8x128xf32> -> vector<8x128xf32>
    %79 = arith.addf %77, %78 : vector<8x128xf32>
    %80 = arith.mulf %79, %23 : vector<8x128xf32>
    %81 = arith.negf %80 : vector<8x128xf32>
    %82 = math.exp %81 : vector<8x128xf32>
    %cst_45 = arith.constant 1.000000e+00 : f32
    %83 = vector.broadcast %cst_45 : f32 to vector<8x128xf32>
    %84 = arith.addf %83, %82 : vector<8x128xf32>
    %85 = arith.divf %83, %84 : vector<8x128xf32>
    %86 = vector.extract_strided_slice %85 {offsets = [0, 0], sizes = [8, 32], strides = [1, 1]} : vector<8x128xf32> to vector<8x32xf32>
    %87 = vector.extract_strided_slice %85 {offsets = [0, 32], sizes = [8, 32], strides = [1, 1]} : vector<8x128xf32> to vector<8x32xf32>
    %88 = vector.extract_strided_slice %85 {offsets = [0, 64], sizes = [8, 32], strides = [1, 1]} : vector<8x128xf32> to vector<8x32xf32>
    %cst_46 = arith.constant 2.000000e+00 : f32
    %89 = vector.broadcast %cst_46 : f32 to vector<8x32xf32>
    %90 = arith.mulf %89, %88 : vector<8x32xf32>
    %cst_47 = arith.constant 1.000000e+00 : f32
    %91 = vector.broadcast %cst_47 : f32 to vector<8x32xf32>
    %92 = arith.subf %90, %91 : vector<8x32xf32>
    %93 = vector.extract_strided_slice %85 {offsets = [0, 96], sizes = [8, 32], strides = [1, 1]} : vector<8x128xf32> to vector<8x32xf32>
    %94 = arith.mulf %87, %75 : vector<8x32xf32>
    %95 = arith.mulf %86, %92 : vector<8x32xf32>
    %96 = arith.addf %94, %95 : vector<8x32xf32>
    %97 = math.tanh %96 : vector<8x32xf32>
    %98 = arith.mulf %93, %97 : vector<8x32xf32>
    %99 = vector.broadcast %c1_i32 : i32 to vector<8x1xi32>
    %100 = arith.cmpi sgt, %10, %99 : vector<8x1xi32>
    %101 = vector.shape_cast %100 : vector<8x1xi1> to vector<8x1xi1>
    %102 = vector.broadcast %101 : vector<8x1xi1> to vector<8x32xi1>
    %103 = arith.select %102, %98, %74 : vector<8x32xi1>, vector<8x32xf32>
    %c0_48 = arith.constant 0 : index
    %c0_49 = arith.constant 0 : index
    %104 = vector.load %arg10[%c0_48, %c0_49] : memref<8x32xf32, #tpu.memory_space<vmem>>, vector<8x32xf32>
    tpu.vector_store %arg10[%c0_48, %c0_49], %103 {strides = array<i32>} : memref<8x32xf32, #tpu.memory_space<vmem>>, vector<8x32xf32>,
    %105 = vector.shape_cast %100 : vector<8x1xi1> to vector<8x1xi1>
    %106 = vector.broadcast %105 : vector<8x1xi1> to vector<8x32xi1>
    %107 = arith.select %106, %96, %75 : vector<8x32xi1>, vector<8x32xf32>
    %c0_50 = arith.constant 0 : index
    %c0_51 = arith.constant 0 : index
    %108 = vector.load %arg11[%c0_50, %c0_51] : memref<8x32xf32, #tpu.memory_space<vmem>>, vector<8x32xf32>
    tpu.vector_store %arg11[%c0_50, %c0_51], %107 {strides = array<i32>} : memref<8x32xf32, #tpu.memory_space<vmem>>, vector<8x32xf32>,
    %cst_52 = arith.constant 0.000000e+00 : f32
    %109 = vector.shape_cast %100 : vector<8x1xi1> to vector<8x1xi1>
    %110 = vector.broadcast %109 : vector<8x1xi1> to vector<8x32xi1>
    %111 = vector.broadcast %cst_52 : f32 to vector<8x32xf32>
    %112 = arith.select %110, %98, %111 : vector<8x32xi1>, vector<8x32xf32>
    %113 = arith.index_cast %73 : i32 to index
    %c0_53 = arith.constant 0 : index
    %114 = vector.load %arg0[%113, %c0_53] : memref<64x32xf32, #tpu.memory_space<vmem>>, vector<8x32xf32>
    %115 = arith.addf %112, %114 : vector<8x32xf32>
    %116 = vector.extract_strided_slice %115 {offsets = [0, 0], sizes = [2, 32], strides = [1, 1]} : vector<8x32xf32> to vector<2x32xf32>
    %117 = vector.shape_cast %116 : vector<2x32xf32> to vector<1x2x32xf32>
    %118 = arith.index_cast %c1_i32 : i32 to index
    %c0_54 = arith.constant 0 : index
    %c0_55 = arith.constant 0 : index
    %119 = vector.load %arg7[%118, %c0_54, %c0_55] : memref<8x2x32xf32, #tpu.memory_space<vmem>>, vector<1x2x32xf32>
    tpu.vector_store %arg7[%118, %c0_54, %c0_55], %117 {strides = array<i32>} : memref<8x2x32xf32, #tpu.memory_space<vmem>>, vector<1x2x32xf32>,
    %c2_i32 = arith.constant 2 : i32
    %c8_i32_56 = arith.constant 8 : i32
    %120 = arith.muli %c2_i32, %c8_i32_56 : i32
    %121 = tpu.assume_multiple %120, 8 : i32
    %c0_57 = arith.constant 0 : index
    %c0_58 = arith.constant 0 : index
    %122 = vector.load %arg10[%c0_57, %c0_58] : memref<8x32xf32, #tpu.memory_space<vmem>>, vector<8x32xf32>
    %c0_59 = arith.constant 0 : index
    %c0_60 = arith.constant 0 : index
    %123 = vector.load %arg11[%c0_59, %c0_60] : memref<8x32xf32, #tpu.memory_space<vmem>>, vector<8x32xf32>
    %124 = arith.index_cast %121 : i32 to index
    %c0_61 = arith.constant 0 : index
    %125 = vector.load %arg12[%124, %c0_61] : memref<64x128xf32, #tpu.memory_space<vmem>>, vector<8x128xf32>
    %cst_62 = arith.constant dense<0.000000e+00> : vector<8x128xf32>
    %126 = tpu.matmul %122, %9, %cst_62 {dimension_numbers = #tpu.dot_dimension_numbers<[1], [0], [0], [1], [0, 0, 1, 1], [], []>} : vector<8x32xf32>, vector<32x128xf32>, vector<8x128xf32> -> vector<8x128xf32>
    %127 = arith.addf %125, %126 : vector<8x128xf32>
    %128 = arith.mulf %127, %23 : vector<8x128xf32>
    %129 = arith.negf %128 : vector<8x128xf32>
    %130 = math.exp %129 : vector<8x128xf32>
    %cst_63 = arith.constant 1.000000e+00 : f32
    %131 = vector.broadcast %cst_63 : f32 to vector<8x128xf32>
    %132 = arith.addf %131, %130 : vector<8x128xf32>
    %133 = arith.divf %131, %132 : vector<8x128xf32>
    %134 = vector.extract_strided_slice %133 {offsets = [0, 0], sizes = [8, 32], strides = [1, 1]} : vector<8x128xf32> to vector<8x32xf32>
    %135 = vector.extract_strided_slice %133 {offsets = [0, 32], sizes = [8, 32], strides = [1, 1]} : vector<8x128xf32> to vector<8x32xf32>
    %136 = vector.extract_strided_slice %133 {offsets = [0, 64], sizes = [8, 32], strides = [1, 1]} : vector<8x128xf32> to vector<8x32xf32>
    %cst_64 = arith.constant 2.000000e+00 : f32
    %137 = vector.broadcast %cst_64 : f32 to vector<8x32xf32>
    %138 = arith.mulf %137, %136 : vector<8x32xf32>
    %cst_65 = arith.constant 1.000000e+00 : f32
    %139 = vector.broadcast %cst_65 : f32 to vector<8x32xf32>
    %140 = arith.subf %138, %139 : vector<8x32xf32>
    %141 = vector.extract_strided_slice %133 {offsets = [0, 96], sizes = [8, 32], strides = [1, 1]} : vector<8x128xf32> to vector<8x32xf32>
    %142 = arith.mulf %135, %123 : vector<8x32xf32>
    %143 = arith.mulf %134, %140 : vector<8x32xf32>
    %144 = arith.addf %142, %143 : vector<8x32xf32>
    %145 = math.tanh %144 : vector<8x32xf32>
    %146 = arith.mulf %141, %145 : vector<8x32xf32>
    %147 = vector.broadcast %c2_i32 : i32 to vector<8x1xi32>
    %148 = arith.cmpi sgt, %10, %147 : vector<8x1xi32>
    %149 = vector.shape_cast %148 : vector<8x1xi1> to vector<8x1xi1>
    %150 = vector.broadcast %149 : vector<8x1xi1> to vector<8x32xi1>
    %151 = arith.select %150, %146, %122 : vector<8x32xi1>, vector<8x32xf32>
    %c0_66 = arith.constant 0 : index
    %c0_67 = arith.constant 0 : index
    %152 = vector.load %arg10[%c0_66, %c0_67] : memref<8x32xf32, #tpu.memory_space<vmem>>, vector<8x32xf32>
    tpu.vector_store %arg10[%c0_66, %c0_67], %151 {strides = array<i32>} : memref<8x32xf32, #tpu.memory_space<vmem>>, vector<8x32xf32>,
    %153 = vector.shape_cast %148 : vector<8x1xi1> to vector<8x1xi1>
    %154 = vector.broadcast %153 : vector<8x1xi1> to vector<8x32xi1>
    %155 = arith.select %154, %144, %123 : vector<8x32xi1>, vector<8x32xf32>
    %c0_68 = arith.constant 0 : index
    %c0_69 = arith.constant 0 : index
    %156 = vector.load %arg11[%c0_68, %c0_69] : memref<8x32xf32, #tpu.memory_space<vmem>>, vector<8x32xf32>
    tpu.vector_store %arg11[%c0_68, %c0_69], %155 {strides = array<i32>} : memref<8x32xf32, #tpu.memory_space<vmem>>, vector<8x32xf32>,
    %cst_70 = arith.constant 0.000000e+00 : f32
    %157 = vector.shape_cast %148 : vector<8x1xi1> to vector<8x1xi1>
    %158 = vector.broadcast %157 : vector<8x1xi1> to vector<8x32xi1>
    %159 = vector.broadcast %cst_70 : f32 to vector<8x32xf32>
    %160 = arith.select %158, %146, %159 : vector<8x32xi1>, vector<8x32xf32>
    %161 = arith.index_cast %121 : i32 to index
    %c0_71 = arith.constant 0 : index
    %162 = vector.load %arg0[%161, %c0_71] : memref<64x32xf32, #tpu.memory_space<vmem>>, vector<8x32xf32>
    %163 = arith.addf %160, %162 : vector<8x32xf32>
    %164 = vector.extract_strided_slice %163 {offsets = [0, 0], sizes = [2, 32], strides = [1, 1]} : vector<8x32xf32> to vector<2x32xf32>
    %165 = vector.shape_cast %164 : vector<2x32xf32> to vector<1x2x32xf32>
    %166 = arith.index_cast %c2_i32 : i32 to index
    %c0_72 = arith.constant 0 : index
    %c0_73 = arith.constant 0 : index
    %167 = vector.load %arg7[%166, %c0_72, %c0_73] : memref<8x2x32xf32, #tpu.memory_space<vmem>>, vector<1x2x32xf32>
    tpu.vector_store %arg7[%166, %c0_72, %c0_73], %165 {strides = array<i32>} : memref<8x2x32xf32, #tpu.memory_space<vmem>>, vector<1x2x32xf32>,
    %c3_i32 = arith.constant 3 : i32
    %c8_i32_74 = arith.constant 8 : i32
    %168 = arith.muli %c3_i32, %c8_i32_74 : i32
    %169 = tpu.assume_multiple %168, 8 : i32
    %c0_75 = arith.constant 0 : index
    %c0_76 = arith.constant 0 : index
    %170 = vector.load %arg10[%c0_75, %c0_76] : memref<8x32xf32, #tpu.memory_space<vmem>>, vector<8x32xf32>
    %c0_77 = arith.constant 0 : index
    %c0_78 = arith.constant 0 : index
    %171 = vector.load %arg11[%c0_77, %c0_78] : memref<8x32xf32, #tpu.memory_space<vmem>>, vector<8x32xf32>
    %172 = arith.index_cast %169 : i32 to index
    %c0_79 = arith.constant 0 : index
    %173 = vector.load %arg12[%172, %c0_79] : memref<64x128xf32, #tpu.memory_space<vmem>>, vector<8x128xf32>
    %cst_80 = arith.constant dense<0.000000e+00> : vector<8x128xf32>
    %174 = tpu.matmul %170, %9, %cst_80 {dimension_numbers = #tpu.dot_dimension_numbers<[1], [0], [0], [1], [0, 0, 1, 1], [], []>} : vector<8x32xf32>, vector<32x128xf32>, vector<8x128xf32> -> vector<8x128xf32>
    %175 = arith.addf %173, %174 : vector<8x128xf32>
    %176 = arith.mulf %175, %23 : vector<8x128xf32>
    %177 = arith.negf %176 : vector<8x128xf32>
    %178 = math.exp %177 : vector<8x128xf32>
    %cst_81 = arith.constant 1.000000e+00 : f32
    %179 = vector.broadcast %cst_81 : f32 to vector<8x128xf32>
    %180 = arith.addf %179, %178 : vector<8x128xf32>
    %181 = arith.divf %179, %180 : vector<8x128xf32>
    %182 = vector.extract_strided_slice %181 {offsets = [0, 0], sizes = [8, 32], strides = [1, 1]} : vector<8x128xf32> to vector<8x32xf32>
    %183 = vector.extract_strided_slice %181 {offsets = [0, 32], sizes = [8, 32], strides = [1, 1]} : vector<8x128xf32> to vector<8x32xf32>
    %184 = vector.extract_strided_slice %181 {offsets = [0, 64], sizes = [8, 32], strides = [1, 1]} : vector<8x128xf32> to vector<8x32xf32>
    %cst_82 = arith.constant 2.000000e+00 : f32
    %185 = vector.broadcast %cst_82 : f32 to vector<8x32xf32>
    %186 = arith.mulf %185, %184 : vector<8x32xf32>
    %cst_83 = arith.constant 1.000000e+00 : f32
    %187 = vector.broadcast %cst_83 : f32 to vector<8x32xf32>
    %188 = arith.subf %186, %187 : vector<8x32xf32>
    %189 = vector.extract_strided_slice %181 {offsets = [0, 96], sizes = [8, 32], strides = [1, 1]} : vector<8x128xf32> to vector<8x32xf32>
    %190 = arith.mulf %183, %171 : vector<8x32xf32>
    %191 = arith.mulf %182, %188 : vector<8x32xf32>
    %192 = arith.addf %190, %191 : vector<8x32xf32>
    %193 = math.tanh %192 : vector<8x32xf32>
    %194 = arith.mulf %189, %193 : vector<8x32xf32>
    %195 = vector.broadcast %c3_i32 : i32 to vector<8x1xi32>
    %196 = arith.cmpi sgt, %10, %195 : vector<8x1xi32>
    %197 = vector.shape_cast %196 : vector<8x1xi1> to vector<8x1xi1>
    %198 = vector.broadcast %197 : vector<8x1xi1> to vector<8x32xi1>
    %199 = arith.select %198, %194, %170 : vector<8x32xi1>, vector<8x32xf32>
    %c0_84 = arith.constant 0 : index
    %c0_85 = arith.constant 0 : index
    %200 = vector.load %arg10[%c0_84, %c0_85] : memref<8x32xf32, #tpu.memory_space<vmem>>, vector<8x32xf32>
    tpu.vector_store %arg10[%c0_84, %c0_85], %199 {strides = array<i32>} : memref<8x32xf32, #tpu.memory_space<vmem>>, vector<8x32xf32>,
    %201 = vector.shape_cast %196 : vector<8x1xi1> to vector<8x1xi1>
    %202 = vector.broadcast %201 : vector<8x1xi1> to vector<8x32xi1>
    %203 = arith.select %202, %192, %171 : vector<8x32xi1>, vector<8x32xf32>
    %c0_86 = arith.constant 0 : index
    %c0_87 = arith.constant 0 : index
    %204 = vector.load %arg11[%c0_86, %c0_87] : memref<8x32xf32, #tpu.memory_space<vmem>>, vector<8x32xf32>
    tpu.vector_store %arg11[%c0_86, %c0_87], %203 {strides = array<i32>} : memref<8x32xf32, #tpu.memory_space<vmem>>, vector<8x32xf32>,
    %cst_88 = arith.constant 0.000000e+00 : f32
    %205 = vector.shape_cast %196 : vector<8x1xi1> to vector<8x1xi1>
    %206 = vector.broadcast %205 : vector<8x1xi1> to vector<8x32xi1>
    %207 = vector.broadcast %cst_88 : f32 to vector<8x32xf32>
    %208 = arith.select %206, %194, %207 : vector<8x32xi1>, vector<8x32xf32>
    %209 = arith.index_cast %169 : i32 to index
    %c0_89 = arith.constant 0 : index
    %210 = vector.load %arg0[%209, %c0_89] : memref<64x32xf32, #tpu.memory_space<vmem>>, vector<8x32xf32>
    %211 = arith.addf %208, %210 : vector<8x32xf32>
    %212 = vector.extract_strided_slice %211 {offsets = [0, 0], sizes = [2, 32], strides = [1, 1]} : vector<8x32xf32> to vector<2x32xf32>
    %213 = vector.shape_cast %212 : vector<2x32xf32> to vector<1x2x32xf32>
    %214 = arith.index_cast %c3_i32 : i32 to index
    %c0_90 = arith.constant 0 : index
    %c0_91 = arith.constant 0 : index
    %215 = vector.load %arg7[%214, %c0_90, %c0_91] : memref<8x2x32xf32, #tpu.memory_space<vmem>>, vector<1x2x32xf32>
    tpu.vector_store %arg7[%214, %c0_90, %c0_91], %213 {strides = array<i32>} : memref<8x2x32xf32, #tpu.memory_space<vmem>>, vector<1x2x32xf32>,
    %c4_i32 = arith.constant 4 : i32
    %c8_i32_92 = arith.constant 8 : i32
    %216 = arith.muli %c4_i32, %c8_i32_92 : i32
    %217 = tpu.assume_multiple %216, 8 : i32
    %c0_93 = arith.constant 0 : index
    %c0_94 = arith.constant 0 : index
    %218 = vector.load %arg10[%c0_93, %c0_94] : memref<8x32xf32, #tpu.memory_space<vmem>>, vector<8x32xf32>
    %c0_95 = arith.constant 0 : index
    %c0_96 = arith.constant 0 : index
    %219 = vector.load %arg11[%c0_95, %c0_96] : memref<8x32xf32, #tpu.memory_space<vmem>>, vector<8x32xf32>
    %220 = arith.index_cast %217 : i32 to index
    %c0_97 = arith.constant 0 : index
    %221 = vector.load %arg12[%220, %c0_97] : memref<64x128xf32, #tpu.memory_space<vmem>>, vector<8x128xf32>
    %cst_98 = arith.constant dense<0.000000e+00> : vector<8x128xf32>
    %222 = tpu.matmul %218, %9, %cst_98 {dimension_numbers = #tpu.dot_dimension_numbers<[1], [0], [0], [1], [0, 0, 1, 1], [], []>} : vector<8x32xf32>, vector<32x128xf32>, vector<8x128xf32> -> vector<8x128xf32>
    %223 = arith.addf %221, %222 : vector<8x128xf32>
    %224 = arith.mulf %223, %23 : vector<8x128xf32>
    %225 = arith.negf %224 : vector<8x128xf32>
    %226 = math.exp %225 : vector<8x128xf32>
    %cst_99 = arith.constant 1.000000e+00 : f32
    %227 = vector.broadcast %cst_99 : f32 to vector<8x128xf32>
    %228 = arith.addf %227, %226 : vector<8x128xf32>
    %229 = arith.divf %227, %228 : vector<8x128xf32>
    %230 = vector.extract_strided_slice %229 {offsets = [0, 0], sizes = [8, 32], strides = [1, 1]} : vector<8x128xf32> to vector<8x32xf32>
    %231 = vector.extract_strided_slice %229 {offsets = [0, 32], sizes = [8, 32], strides = [1, 1]} : vector<8x128xf32> to vector<8x32xf32>
    %232 = vector.extract_strided_slice %229 {offsets = [0, 64], sizes = [8, 32], strides = [1, 1]} : vector<8x128xf32> to vector<8x32xf32>
    %cst_100 = arith.constant 2.000000e+00 : f32
    %233 = vector.broadcast %cst_100 : f32 to vector<8x32xf32>
    %234 = arith.mulf %233, %232 : vector<8x32xf32>
    %cst_101 = arith.constant 1.000000e+00 : f32
    %235 = vector.broadcast %cst_101 : f32 to vector<8x32xf32>
    %236 = arith.subf %234, %235 : vector<8x32xf32>
    %237 = vector.extract_strided_slice %229 {offsets = [0, 96], sizes = [8, 32], strides = [1, 1]} : vector<8x128xf32> to vector<8x32xf32>
    %238 = arith.mulf %231, %219 : vector<8x32xf32>
    %239 = arith.mulf %230, %236 : vector<8x32xf32>
    %240 = arith.addf %238, %239 : vector<8x32xf32>
    %241 = math.tanh %240 : vector<8x32xf32>
    %242 = arith.mulf %237, %241 : vector<8x32xf32>
    %243 = vector.broadcast %c4_i32 : i32 to vector<8x1xi32>
    %244 = arith.cmpi sgt, %10, %243 : vector<8x1xi32>
    %245 = vector.shape_cast %244 : vector<8x1xi1> to vector<8x1xi1>
    %246 = vector.broadcast %245 : vector<8x1xi1> to vector<8x32xi1>
    %247 = arith.select %246, %242, %218 : vector<8x32xi1>, vector<8x32xf32>
    %c0_102 = arith.constant 0 : index
    %c0_103 = arith.constant 0 : index
    %248 = vector.load %arg10[%c0_102, %c0_103] : memref<8x32xf32, #tpu.memory_space<vmem>>, vector<8x32xf32>
    tpu.vector_store %arg10[%c0_102, %c0_103], %247 {strides = array<i32>} : memref<8x32xf32, #tpu.memory_space<vmem>>, vector<8x32xf32>,
    %249 = vector.shape_cast %244 : vector<8x1xi1> to vector<8x1xi1>
    %250 = vector.broadcast %249 : vector<8x1xi1> to vector<8x32xi1>
    %251 = arith.select %250, %240, %219 : vector<8x32xi1>, vector<8x32xf32>
    %c0_104 = arith.constant 0 : index
    %c0_105 = arith.constant 0 : index
    %252 = vector.load %arg11[%c0_104, %c0_105] : memref<8x32xf32, #tpu.memory_space<vmem>>, vector<8x32xf32>
    tpu.vector_store %arg11[%c0_104, %c0_105], %251 {strides = array<i32>} : memref<8x32xf32, #tpu.memory_space<vmem>>, vector<8x32xf32>,
    %cst_106 = arith.constant 0.000000e+00 : f32
    %253 = vector.shape_cast %244 : vector<8x1xi1> to vector<8x1xi1>
    %254 = vector.broadcast %253 : vector<8x1xi1> to vector<8x32xi1>
    %255 = vector.broadcast %cst_106 : f32 to vector<8x32xf32>
    %256 = arith.select %254, %242, %255 : vector<8x32xi1>, vector<8x32xf32>
    %257 = arith.index_cast %217 : i32 to index
    %c0_107 = arith.constant 0 : index
    %258 = vector.load %arg0[%257, %c0_107] : memref<64x32xf32, #tpu.memory_space<vmem>>, vector<8x32xf32>
    %259 = arith.addf %256, %258 : vector<8x32xf32>
    %260 = vector.extract_strided_slice %259 {offsets = [0, 0], sizes = [2, 32], strides = [1, 1]} : vector<8x32xf32> to vector<2x32xf32>
    %261 = vector.shape_cast %260 : vector<2x32xf32> to vector<1x2x32xf32>
    %262 = arith.index_cast %c4_i32 : i32 to index
    %c0_108 = arith.constant 0 : index
    %c0_109 = arith.constant 0 : index
    %263 = vector.load %arg7[%262, %c0_108, %c0_109] : memref<8x2x32xf32, #tpu.memory_space<vmem>>, vector<1x2x32xf32>
    tpu.vector_store %arg7[%262, %c0_108, %c0_109], %261 {strides = array<i32>} : memref<8x2x32xf32, #tpu.memory_space<vmem>>, vector<1x2x32xf32>,
    %c5_i32 = arith.constant 5 : i32
    %c8_i32_110 = arith.constant 8 : i32
    %264 = arith.muli %c5_i32, %c8_i32_110 : i32
    %265 = tpu.assume_multiple %264, 8 : i32
    %c0_111 = arith.constant 0 : index
    %c0_112 = arith.constant 0 : index
    %266 = vector.load %arg10[%c0_111, %c0_112] : memref<8x32xf32, #tpu.memory_space<vmem>>, vector<8x32xf32>
    %c0_113 = arith.constant 0 : index
    %c0_114 = arith.constant 0 : index
    %267 = vector.load %arg11[%c0_113, %c0_114] : memref<8x32xf32, #tpu.memory_space<vmem>>, vector<8x32xf32>
    %268 = arith.index_cast %265 : i32 to index
    %c0_115 = arith.constant 0 : index
    %269 = vector.load %arg12[%268, %c0_115] : memref<64x128xf32, #tpu.memory_space<vmem>>, vector<8x128xf32>
    %cst_116 = arith.constant dense<0.000000e+00> : vector<8x128xf32>
    %270 = tpu.matmul %266, %9, %cst_116 {dimension_numbers = #tpu.dot_dimension_numbers<[1], [0], [0], [1], [0, 0, 1, 1], [], []>} : vector<8x32xf32>, vector<32x128xf32>, vector<8x128xf32> -> vector<8x128xf32>
    %271 = arith.addf %269, %270 : vector<8x128xf32>
    %272 = arith.mulf %271, %23 : vector<8x128xf32>
    %273 = arith.negf %272 : vector<8x128xf32>
    %274 = math.exp %273 : vector<8x128xf32>
    %cst_117 = arith.constant 1.000000e+00 : f32
    %275 = vector.broadcast %cst_117 : f32 to vector<8x128xf32>
    %276 = arith.addf %275, %274 : vector<8x128xf32>
    %277 = arith.divf %275, %276 : vector<8x128xf32>
    %278 = vector.extract_strided_slice %277 {offsets = [0, 0], sizes = [8, 32], strides = [1, 1]} : vector<8x128xf32> to vector<8x32xf32>
    %279 = vector.extract_strided_slice %277 {offsets = [0, 32], sizes = [8, 32], strides = [1, 1]} : vector<8x128xf32> to vector<8x32xf32>
    %280 = vector.extract_strided_slice %277 {offsets = [0, 64], sizes = [8, 32], strides = [1, 1]} : vector<8x128xf32> to vector<8x32xf32>
    %cst_118 = arith.constant 2.000000e+00 : f32
    %281 = vector.broadcast %cst_118 : f32 to vector<8x32xf32>
    %282 = arith.mulf %281, %280 : vector<8x32xf32>
    %cst_119 = arith.constant 1.000000e+00 : f32
    %283 = vector.broadcast %cst_119 : f32 to vector<8x32xf32>
    %284 = arith.subf %282, %283 : vector<8x32xf32>
    %285 = vector.extract_strided_slice %277 {offsets = [0, 96], sizes = [8, 32], strides = [1, 1]} : vector<8x128xf32> to vector<8x32xf32>
    %286 = arith.mulf %279, %267 : vector<8x32xf32>
    %287 = arith.mulf %278, %284 : vector<8x32xf32>
    %288 = arith.addf %286, %287 : vector<8x32xf32>
    %289 = math.tanh %288 : vector<8x32xf32>
    %290 = arith.mulf %285, %289 : vector<8x32xf32>
    %291 = vector.broadcast %c5_i32 : i32 to vector<8x1xi32>
    %292 = arith.cmpi sgt, %10, %291 : vector<8x1xi32>
    %293 = vector.shape_cast %292 : vector<8x1xi1> to vector<8x1xi1>
    %294 = vector.broadcast %293 : vector<8x1xi1> to vector<8x32xi1>
    %295 = arith.select %294, %290, %266 : vector<8x32xi1>, vector<8x32xf32>
    %c0_120 = arith.constant 0 : index
    %c0_121 = arith.constant 0 : index
    %296 = vector.load %arg10[%c0_120, %c0_121] : memref<8x32xf32, #tpu.memory_space<vmem>>, vector<8x32xf32>
    tpu.vector_store %arg10[%c0_120, %c0_121], %295 {strides = array<i32>} : memref<8x32xf32, #tpu.memory_space<vmem>>, vector<8x32xf32>,
    %297 = vector.shape_cast %292 : vector<8x1xi1> to vector<8x1xi1>
    %298 = vector.broadcast %297 : vector<8x1xi1> to vector<8x32xi1>
    %299 = arith.select %298, %288, %267 : vector<8x32xi1>, vector<8x32xf32>
    %c0_122 = arith.constant 0 : index
    %c0_123 = arith.constant 0 : index
    %300 = vector.load %arg11[%c0_122, %c0_123] : memref<8x32xf32, #tpu.memory_space<vmem>>, vector<8x32xf32>
    tpu.vector_store %arg11[%c0_122, %c0_123], %299 {strides = array<i32>} : memref<8x32xf32, #tpu.memory_space<vmem>>, vector<8x32xf32>,
    %cst_124 = arith.constant 0.000000e+00 : f32
    %301 = vector.shape_cast %292 : vector<8x1xi1> to vector<8x1xi1>
    %302 = vector.broadcast %301 : vector<8x1xi1> to vector<8x32xi1>
    %303 = vector.broadcast %cst_124 : f32 to vector<8x32xf32>
    %304 = arith.select %302, %290, %303 : vector<8x32xi1>, vector<8x32xf32>
    %305 = arith.index_cast %265 : i32 to index
    %c0_125 = arith.constant 0 : index
    %306 = vector.load %arg0[%305, %c0_125] : memref<64x32xf32, #tpu.memory_space<vmem>>, vector<8x32xf32>
    %307 = arith.addf %304, %306 : vector<8x32xf32>
    %308 = vector.extract_strided_slice %307 {offsets = [0, 0], sizes = [2, 32], strides = [1, 1]} : vector<8x32xf32> to vector<2x32xf32>
    %309 = vector.shape_cast %308 : vector<2x32xf32> to vector<1x2x32xf32>
    %310 = arith.index_cast %c5_i32 : i32 to index
    %c0_126 = arith.constant 0 : index
    %c0_127 = arith.constant 0 : index
    %311 = vector.load %arg7[%310, %c0_126, %c0_127] : memref<8x2x32xf32, #tpu.memory_space<vmem>>, vector<1x2x32xf32>
    tpu.vector_store %arg7[%310, %c0_126, %c0_127], %309 {strides = array<i32>} : memref<8x2x32xf32, #tpu.memory_space<vmem>>, vector<1x2x32xf32>,
    %c6_i32 = arith.constant 6 : i32
    %c8_i32_128 = arith.constant 8 : i32
    %312 = arith.muli %c6_i32, %c8_i32_128 : i32
    %313 = tpu.assume_multiple %312, 8 : i32
    %c0_129 = arith.constant 0 : index
    %c0_130 = arith.constant 0 : index
    %314 = vector.load %arg10[%c0_129, %c0_130] : memref<8x32xf32, #tpu.memory_space<vmem>>, vector<8x32xf32>
    %c0_131 = arith.constant 0 : index
    %c0_132 = arith.constant 0 : index
    %315 = vector.load %arg11[%c0_131, %c0_132] : memref<8x32xf32, #tpu.memory_space<vmem>>, vector<8x32xf32>
    %316 = arith.index_cast %313 : i32 to index
    %c0_133 = arith.constant 0 : index
    %317 = vector.load %arg12[%316, %c0_133] : memref<64x128xf32, #tpu.memory_space<vmem>>, vector<8x128xf32>
    %cst_134 = arith.constant dense<0.000000e+00> : vector<8x128xf32>
    %318 = tpu.matmul %314, %9, %cst_134 {dimension_numbers = #tpu.dot_dimension_numbers<[1], [0], [0], [1], [0, 0, 1, 1], [], []>} : vector<8x32xf32>, vector<32x128xf32>, vector<8x128xf32> -> vector<8x128xf32>
    %319 = arith.addf %317, %318 : vector<8x128xf32>
    %320 = arith.mulf %319, %23 : vector<8x128xf32>
    %321 = arith.negf %320 : vector<8x128xf32>
    %322 = math.exp %321 : vector<8x128xf32>
    %cst_135 = arith.constant 1.000000e+00 : f32
    %323 = vector.broadcast %cst_135 : f32 to vector<8x128xf32>
    %324 = arith.addf %323, %322 : vector<8x128xf32>
    %325 = arith.divf %323, %324 : vector<8x128xf32>
    %326 = vector.extract_strided_slice %325 {offsets = [0, 0], sizes = [8, 32], strides = [1, 1]} : vector<8x128xf32> to vector<8x32xf32>
    %327 = vector.extract_strided_slice %325 {offsets = [0, 32], sizes = [8, 32], strides = [1, 1]} : vector<8x128xf32> to vector<8x32xf32>
    %328 = vector.extract_strided_slice %325 {offsets = [0, 64], sizes = [8, 32], strides = [1, 1]} : vector<8x128xf32> to vector<8x32xf32>
    %cst_136 = arith.constant 2.000000e+00 : f32
    %329 = vector.broadcast %cst_136 : f32 to vector<8x32xf32>
    %330 = arith.mulf %329, %328 : vector<8x32xf32>
    %cst_137 = arith.constant 1.000000e+00 : f32
    %331 = vector.broadcast %cst_137 : f32 to vector<8x32xf32>
    %332 = arith.subf %330, %331 : vector<8x32xf32>
    %333 = vector.extract_strided_slice %325 {offsets = [0, 96], sizes = [8, 32], strides = [1, 1]} : vector<8x128xf32> to vector<8x32xf32>
    %334 = arith.mulf %327, %315 : vector<8x32xf32>
    %335 = arith.mulf %326, %332 : vector<8x32xf32>
    %336 = arith.addf %334, %335 : vector<8x32xf32>
    %337 = math.tanh %336 : vector<8x32xf32>
    %338 = arith.mulf %333, %337 : vector<8x32xf32>
    %339 = vector.broadcast %c6_i32 : i32 to vector<8x1xi32>
    %340 = arith.cmpi sgt, %10, %339 : vector<8x1xi32>
    %341 = vector.shape_cast %340 : vector<8x1xi1> to vector<8x1xi1>
    %342 = vector.broadcast %341 : vector<8x1xi1> to vector<8x32xi1>
    %343 = arith.select %342, %338, %314 : vector<8x32xi1>, vector<8x32xf32>
    %c0_138 = arith.constant 0 : index
    %c0_139 = arith.constant 0 : index
    %344 = vector.load %arg10[%c0_138, %c0_139] : memref<8x32xf32, #tpu.memory_space<vmem>>, vector<8x32xf32>
    tpu.vector_store %arg10[%c0_138, %c0_139], %343 {strides = array<i32>} : memref<8x32xf32, #tpu.memory_space<vmem>>, vector<8x32xf32>,
    %345 = vector.shape_cast %340 : vector<8x1xi1> to vector<8x1xi1>
    %346 = vector.broadcast %345 : vector<8x1xi1> to vector<8x32xi1>
    %347 = arith.select %346, %336, %315 : vector<8x32xi1>, vector<8x32xf32>
    %c0_140 = arith.constant 0 : index
    %c0_141 = arith.constant 0 : index
    %348 = vector.load %arg11[%c0_140, %c0_141] : memref<8x32xf32, #tpu.memory_space<vmem>>, vector<8x32xf32>
    tpu.vector_store %arg11[%c0_140, %c0_141], %347 {strides = array<i32>} : memref<8x32xf32, #tpu.memory_space<vmem>>, vector<8x32xf32>,
    %cst_142 = arith.constant 0.000000e+00 : f32
    %349 = vector.shape_cast %340 : vector<8x1xi1> to vector<8x1xi1>
    %350 = vector.broadcast %349 : vector<8x1xi1> to vector<8x32xi1>
    %351 = vector.broadcast %cst_142 : f32 to vector<8x32xf32>
    %352 = arith.select %350, %338, %351 : vector<8x32xi1>, vector<8x32xf32>
    %353 = arith.index_cast %313 : i32 to index
    %c0_143 = arith.constant 0 : index
    %354 = vector.load %arg0[%353, %c0_143] : memref<64x32xf32, #tpu.memory_space<vmem>>, vector<8x32xf32>
    %355 = arith.addf %352, %354 : vector<8x32xf32>
    %356 = vector.extract_strided_slice %355 {offsets = [0, 0], sizes = [2, 32], strides = [1, 1]} : vector<8x32xf32> to vector<2x32xf32>
    %357 = vector.shape_cast %356 : vector<2x32xf32> to vector<1x2x32xf32>
    %358 = arith.index_cast %c6_i32 : i32 to index
    %c0_144 = arith.constant 0 : index
    %c0_145 = arith.constant 0 : index
    %359 = vector.load %arg7[%358, %c0_144, %c0_145] : memref<8x2x32xf32, #tpu.memory_space<vmem>>, vector<1x2x32xf32>
    tpu.vector_store %arg7[%358, %c0_144, %c0_145], %357 {strides = array<i32>} : memref<8x2x32xf32, #tpu.memory_space<vmem>>, vector<1x2x32xf32>,
    %c7_i32 = arith.constant 7 : i32
    %c8_i32_146 = arith.constant 8 : i32
    %360 = arith.muli %c7_i32, %c8_i32_146 : i32
    %361 = tpu.assume_multiple %360, 8 : i32
    %c0_147 = arith.constant 0 : index
    %c0_148 = arith.constant 0 : index
    %362 = vector.load %arg10[%c0_147, %c0_148] : memref<8x32xf32, #tpu.memory_space<vmem>>, vector<8x32xf32>
    %c0_149 = arith.constant 0 : index
    %c0_150 = arith.constant 0 : index
    %363 = vector.load %arg11[%c0_149, %c0_150] : memref<8x32xf32, #tpu.memory_space<vmem>>, vector<8x32xf32>
    %364 = arith.index_cast %361 : i32 to index
    %c0_151 = arith.constant 0 : index
    %365 = vector.load %arg12[%364, %c0_151] : memref<64x128xf32, #tpu.memory_space<vmem>>, vector<8x128xf32>
    %cst_152 = arith.constant dense<0.000000e+00> : vector<8x128xf32>
    %366 = tpu.matmul %362, %9, %cst_152 {dimension_numbers = #tpu.dot_dimension_numbers<[1], [0], [0], [1], [0, 0, 1, 1], [], []>} : vector<8x32xf32>, vector<32x128xf32>, vector<8x128xf32> -> vector<8x128xf32>
    %367 = arith.addf %365, %366 : vector<8x128xf32>
    %368 = arith.mulf %367, %23 : vector<8x128xf32>
    %369 = arith.negf %368 : vector<8x128xf32>
    %370 = math.exp %369 : vector<8x128xf32>
    %cst_153 = arith.constant 1.000000e+00 : f32
    %371 = vector.broadcast %cst_153 : f32 to vector<8x128xf32>
    %372 = arith.addf %371, %370 : vector<8x128xf32>
    %373 = arith.divf %371, %372 : vector<8x128xf32>
    %374 = vector.extract_strided_slice %373 {offsets = [0, 0], sizes = [8, 32], strides = [1, 1]} : vector<8x128xf32> to vector<8x32xf32>
    %375 = vector.extract_strided_slice %373 {offsets = [0, 32], sizes = [8, 32], strides = [1, 1]} : vector<8x128xf32> to vector<8x32xf32>
    %376 = vector.extract_strided_slice %373 {offsets = [0, 64], sizes = [8, 32], strides = [1, 1]} : vector<8x128xf32> to vector<8x32xf32>
    %cst_154 = arith.constant 2.000000e+00 : f32
    %377 = vector.broadcast %cst_154 : f32 to vector<8x32xf32>
    %378 = arith.mulf %377, %376 : vector<8x32xf32>
    %cst_155 = arith.constant 1.000000e+00 : f32
    %379 = vector.broadcast %cst_155 : f32 to vector<8x32xf32>
    %380 = arith.subf %378, %379 : vector<8x32xf32>
    %381 = vector.extract_strided_slice %373 {offsets = [0, 96], sizes = [8, 32], strides = [1, 1]} : vector<8x128xf32> to vector<8x32xf32>
    %382 = arith.mulf %375, %363 : vector<8x32xf32>
    %383 = arith.mulf %374, %380 : vector<8x32xf32>
    %384 = arith.addf %382, %383 : vector<8x32xf32>
    %385 = math.tanh %384 : vector<8x32xf32>
    %386 = arith.mulf %381, %385 : vector<8x32xf32>
    %387 = vector.broadcast %c7_i32 : i32 to vector<8x1xi32>
    %388 = arith.cmpi sgt, %10, %387 : vector<8x1xi32>
    %389 = vector.shape_cast %388 : vector<8x1xi1> to vector<8x1xi1>
    %390 = vector.broadcast %389 : vector<8x1xi1> to vector<8x32xi1>
    %391 = arith.select %390, %386, %362 : vector<8x32xi1>, vector<8x32xf32>
    %c0_156 = arith.constant 0 : index
    %c0_157 = arith.constant 0 : index
    %392 = vector.load %arg10[%c0_156, %c0_157] : memref<8x32xf32, #tpu.memory_space<vmem>>, vector<8x32xf32>
    tpu.vector_store %arg10[%c0_156, %c0_157], %391 {strides = array<i32>} : memref<8x32xf32, #tpu.memory_space<vmem>>, vector<8x32xf32>,
    %393 = vector.shape_cast %388 : vector<8x1xi1> to vector<8x1xi1>
    %394 = vector.broadcast %393 : vector<8x1xi1> to vector<8x32xi1>
    %395 = arith.select %394, %384, %363 : vector<8x32xi1>, vector<8x32xf32>
    %c0_158 = arith.constant 0 : index
    %c0_159 = arith.constant 0 : index
    %396 = vector.load %arg11[%c0_158, %c0_159] : memref<8x32xf32, #tpu.memory_space<vmem>>, vector<8x32xf32>
    tpu.vector_store %arg11[%c0_158, %c0_159], %395 {strides = array<i32>} : memref<8x32xf32, #tpu.memory_space<vmem>>, vector<8x32xf32>,
    %cst_160 = arith.constant 0.000000e+00 : f32
    %397 = vector.shape_cast %388 : vector<8x1xi1> to vector<8x1xi1>
    %398 = vector.broadcast %397 : vector<8x1xi1> to vector<8x32xi1>
    %399 = vector.broadcast %cst_160 : f32 to vector<8x32xf32>
    %400 = arith.select %398, %386, %399 : vector<8x32xi1>, vector<8x32xf32>
    %401 = arith.index_cast %361 : i32 to index
    %c0_161 = arith.constant 0 : index
    %402 = vector.load %arg0[%401, %c0_161] : memref<64x32xf32, #tpu.memory_space<vmem>>, vector<8x32xf32>
    %403 = arith.addf %400, %402 : vector<8x32xf32>
    %404 = vector.extract_strided_slice %403 {offsets = [0, 0], sizes = [2, 32], strides = [1, 1]} : vector<8x32xf32> to vector<2x32xf32>
    %405 = vector.shape_cast %404 : vector<2x32xf32> to vector<1x2x32xf32>
    %406 = arith.index_cast %c7_i32 : i32 to index
    %c0_162 = arith.constant 0 : index
    %c0_163 = arith.constant 0 : index
    %407 = vector.load %arg7[%406, %c0_162, %c0_163] : memref<8x2x32xf32, #tpu.memory_space<vmem>>, vector<1x2x32xf32>
    tpu.vector_store %arg7[%406, %c0_162, %c0_163], %405 {strides = array<i32>} : memref<8x2x32xf32, #tpu.memory_space<vmem>>, vector<1x2x32xf32>,
    %c8_i32_164 = arith.constant 8 : i32
    %c0_165 = arith.constant 0 : index
    %c0_166 = arith.constant 0 : index
    %408 = vector.load %arg10[%c0_165, %c0_166] : memref<8x32xf32, #tpu.memory_space<vmem>>, vector<2x32xf32>
    %c0_167 = arith.constant 0 : index
    %c0_168 = arith.constant 0 : index
    %409 = vector.load %arg8[%c0_167, %c0_168] : memref<2x32xf32, #tpu.memory_space<vmem>>, vector<2x32xf32>
    tpu.vector_store %arg8[%c0_167, %c0_168], %408 {strides = array<i32>} : memref<2x32xf32, #tpu.memory_space<vmem>>, vector<2x32xf32>,
    %c0_169 = arith.constant 0 : index
    %c0_170 = arith.constant 0 : index
    %410 = vector.load %arg11[%c0_169, %c0_170] : memref<8x32xf32, #tpu.memory_space<vmem>>, vector<2x32xf32>
    %c0_171 = arith.constant 0 : index
    %c0_172 = arith.constant 0 : index
    %411 = vector.load %arg9[%c0_171, %c0_172] : memref<2x32xf32, #tpu.memory_space<vmem>>, vector<2x32xf32>
    tpu.vector_store %arg9[%c0_171, %c0_172], %410 {strides = array<i32>} : memref<2x32xf32, #tpu.memory_space<vmem>>, vector<2x32xf32>,
    return
  }
}

</mosaic_0001>

<llo_original>
// kernel: tpu_custom_call.1
$region0: #{tpu_custom_call.1}
  #allocation0 [shape = 'u32[]', space=smem, size = 0x4, offset = 0x4, fixed_abs, tag = 'smem constant byte address 0x4 - core index']
  #allocation1 [shape = 'u32[144,128]{1,0:T(1,128)}', space=vmem, size = 0x12000, scoped, tag = 'internal scratch']
  #allocation2 [shape = 'f32[8,32]{1,0:T(8,128)}', space=vmem, size = 0x1000, scoped, tag = 'scratch operand']
  #allocation3 [shape = 'f32[8,32]{1,0:T(8,128)}', space=vmem, size = 0x1000, scoped, tag = 'scratch operand']
  #allocation4 [shape = 'f32[64,128]{1,0:T(8,128)}', space=vmem, size = 0x8000, scoped, tag = 'scratch operand']
  %s0 = inlined_call_operand.vmem [shape: f32[64,32], index: 0, kind: input, shape index: {}]
  %s1 = inlined_call_operand.vmem [shape: f32[32,128], index: 1, kind: input, shape index: {}]
  %s2 = inlined_call_operand.vmem [shape: f32[8,32], index: 2, kind: input, shape index: {}]
  %s3 = inlined_call_operand.vmem [shape: f32[8,32], index: 3, kind: input, shape index: {}]
  %s4 = inlined_call_operand.vmem [shape: f32[32,128], index: 4, kind: input, shape index: {}]
  %s5 = inlined_call_operand.vmem [shape: f32[1,128], index: 5, kind: input, shape index: {}]
  %s6 = inlined_call_operand.vmem [shape: s32[8,1], index: 6, kind: input, shape index: {}]
  %s7 = inlined_call_operand.hbm [shape: f32[8,2,32], index: 7, kind: output, shape index: {0}]
  %s8 = inlined_call_operand.hbm [shape: f32[2,32], index: 8, kind: output, shape index: {1}]
  %s9 = inlined_call_operand.hbm [shape: f32[2,32], index: 9, kind: output, shape index: {2}]
  %10 = xla_tuple %s7, %s8, %s9
  %s11 = sld [smem:[#allocation0]]
  $region54: #{tpu_custom_call.1} parent=0
    _
  %s13 = ssub.s32 1, %s11
  %s14 = scalar_select 0, %s13, %s11
  $region1: #{tpu_custom_call.1} parent=0
    #allocation5 [shape = 'u8[8192]{0}', space=vmem, size = 0x2000, scoped, tag = 'output window, operand 0, single buffered']
    #allocation6 [shape = 's32[1]{0}', space=sflag, size = 0x4, scoped, tag = 'scoped memory for tpu_custom_call.1']
    #allocation7 [shape = 'u8[1024]{0}', space=vmem, size = 0x400, scoped, tag = 'output window, operand 1, single buffered']
    #allocation8 [shape = 's32[1]{0}', space=sflag, size = 0x4, scoped, tag = 'scoped memory for tpu_custom_call.1']
    #allocation9 [shape = 'u8[1024]{0}', space=vmem, size = 0x400, scoped, tag = 'output window, operand 2, single buffered']
    %15 = vsyncpa [#allocation6], 0
    %16 = vsyncpa [#allocation8], 0
    // Predicated region
    $region2: #{tpu_custom_call.1} parent=1 // pred_check
      _
    $region3: #{tpu_custom_call.1} parent=1 // pred_check_branch
      %18 = sbr.rel (0) target = $region5
    $region4: #{tpu_custom_call.1} parent=1 // pred_region
      _
    $region5: #{tpu_custom_call.1} parent=1 // pred_fallthru
      _
    // Predicated region
    $region6: #{tpu_custom_call.1} parent=1 // pred_check
      _
    $region7: #{tpu_custom_call.1} parent=1 // pred_check_branch
      %20 = sbr.rel (0) target = $region9
    $region8: #{tpu_custom_call.1} parent=1 // pred_region
      _
    $region9: #{tpu_custom_call.1} parent=1 // pred_fallthru
      _
    // Predicated region
    $region10: #{tpu_custom_call.1} parent=1 // pred_check
      _
    $region11: #{tpu_custom_call.1} parent=1 // pred_check_branch
      %22 = sbr.rel (0) target = $region13
    $region12: #{tpu_custom_call.1} parent=1 // pred_region
      _
    $region13: #{tpu_custom_call.1} parent=1 // pred_fallthru
      _
    // Predicated region
    $region14: #{tpu_custom_call.1} parent=1 // pred_check
      _
    $region15: #{tpu_custom_call.1} parent=1 // pred_check_branch
      %24 = sbr.rel (0) target = $region17
    $region16: #{tpu_custom_call.1} parent=1 // pred_region
      _
    $region17: #{tpu_custom_call.1} parent=1 // pred_fallthru
      _
    // Predicated region
    $region18: #{tpu_custom_call.1} parent=1 // pred_check
      _
    $region19: #{tpu_custom_call.1} parent=1 // pred_check_branch
      %26 = sbr.rel (0) target = $region21
    $region20: #{tpu_custom_call.1} parent=1 // pred_region
      _
    $region21: #{tpu_custom_call.1} parent=1 // pred_fallthru
      _
    // Predicated region
    $region22: #{tpu_custom_call.1} parent=1 // pred_check
      _
    $region23: #{tpu_custom_call.1} parent=1 // pred_check_branch
      %28 = sbr.rel (0) target = $region25
    $region24: #{tpu_custom_call.1} parent=1 // pred_region
      _
    $region25: #{tpu_custom_call.1} parent=1 // pred_fallthru
      _
    // Predicated region
    $region26: #{tpu_custom_call.1} parent=1 // pred_check
      _
    $region27: #{tpu_custom_call.1} parent=1 // pred_check_branch
      %30 = sbr.rel (0) target = $region29
    $region28: #{tpu_custom_call.1} parent=1 // pred_region
      _
    $region29: #{tpu_custom_call.1} parent=1 // pred_fallthru
      _
    %v32 = vld [vmem:[%s0] sm:$0xff]
    %v33 = vld [vmem:[%s0 + $0x8] sm:$0xff]
    %v34 = vld [vmem:[%s0 + $0x10] sm:$0xff]
    %v35 = vld [vmem:[%s0 + $0x18] sm:$0xff]
    %v36 = vld [vmem:[%s0 + $0x20] sm:$0xff]
    %v37 = vld [vmem:[%s0 + $0x28] sm:$0xff]
    %v38 = vld [vmem:[%s0 + $0x30] sm:$0xff]
    %v39 = vld [vmem:[%s0 + $0x38] sm:$0xff]
    %v40 = vpack.c.bf16 %v33, %v32
    %v41 = vpack.c.bf16 %v35, %v34
    %v42 = vpack.c.bf16 %v37, %v36
    %v43 = vpack.c.bf16 %v39, %v38
    %v44 = vld [vmem:[%s1] sm:$0xff]
    %v45 = vld [vmem:[%s1 + $0x8] sm:$0xff]
    %v46 = vld [vmem:[%s1 + $0x10] sm:$0xff]
    %v47 = vld [vmem:[%s1 + $0x18] sm:$0xff]
    %v48 = vpack.c.bf16 %v45, %v44
    %v49 = vpack.c.bf16 %v47, %v46
    %v50 = vld [vmem:[%s5] sm:$0x1]
    %v52 = vlaneseq
    %v53 = vshrl.u32 %v52, 7
    %v54 = vsub.s32 0, %v53
    %v55 = vrot.slane %v50, %v54
    %vm57 = vcmask 261120
    %v59 = vsel %vm57, %v40, 0
    %v62 = vsel %vm57, %v41, 0
    %v65 = vsel %vm57, %v42, 0
    %v68 = vsel %vm57, %v43, 0
    %70 = vmatprep.subr.bf16.mxu0 0
    %71 = vmatpush1.bf16.msra.mxu0 %v48
    %72 = vmatprep.subr.bf16.mxu0 0
    %73 = vmatpush1.bf16.msra.mxu0 %v49
    %74 = vmatprep.subr.bf16.mxu0 0
    %75 = vmatpush1.bf16.msra.mxu0 0
    %76 = vmatprep.subr.bf16.mxu0 0
    %77 = vmatpush1.bf16.msra.mxu0 0
    %78 = vmatprep.subr.bf16.mxu0 0
    %79 = vmatpush1.bf16.msra.mxu0 0
    %80 = vmatprep.subr.bf16.mxu0 0
    %81 = vmatpush1.bf16.msra.mxu0 0
    %82 = vmatprep.subr.bf16.mxu0 0
    %83 = vmatpush1.bf16.msra.mxu0 0
    %84 = vmatprep.subr.bf16.mxu0 0
    %85 = vmatpush1.bf16.msra.mxu0 0
    %86 = vmatprep.subr.bf16.mxu0 0
    %87 = vmatpush1.bf16.msra.mxu0 0
    %88 = vmatprep.subr.bf16.mxu0 0
    %89 = vmatpush1.bf16.msra.mxu0 0
    %90 = vmatprep.subr.bf16.mxu0 0
    %91 = vmatpush1.bf16.msra.mxu0 0
    %92 = vmatprep.subr.bf16.mxu0 0
    %93 = vmatpush1.bf16.msra.mxu0 0
    %94 = vmatprep.subr.bf16.mxu0 0
    %95 = vmatpush1.bf16.msra.mxu0 0
    %96 = vmatprep.subr.bf16.mxu0 0
    %97 = vmatpush1.bf16.msra.mxu0 0
    %98 = vmatprep.subr.bf16.mxu0 0
    %99 = vmatpush1.bf16.msra.mxu0 0
    %100 = vmatprep.subr.bf16.mxu0 0
    %101 = vmatpush1.bf16.msra.mxu0 0
    %102 = vmatprep.mubr.bf16.mxu0 0
    %103 = vmatmul.mubr.bf16.gmra.mrb[0].mxu0 %v59
    %v104 = vpop.f32.mrb[0].mxu0
    %v105 = vadd.f32 %v55, %v104
    %v106 = vpop.f32.mrb[0].mxu0
    %v107 = vpop.f32.mrb[0].mxu0
    %v108 = vadd.f32 %v55, %v107
    %v109 = vpop.f32.mrb[0].mxu0
    %110 = vmatprep.mubr.bf16.mxu0 0
    %111 = vmatmul.mubr.bf16.gmra.mrb[0].mxu0 %v62
    %v112 = vpop.f32.mrb[0].mxu0
    %v113 = vadd.f32 %v55, %v112
    %v114 = vpop.f32.mrb[0].mxu0
    %v115 = vpop.f32.mrb[0].mxu0
    %v116 = vadd.f32 %v55, %v115
    %v117 = vpop.f32.mrb[0].mxu0
    %118 = vmatprep.mubr.bf16.mxu0 0
    %119 = vmatmul.mubr.bf16.gmra.mrb[0].mxu0 %v65
    %v120 = vpop.f32.mrb[0].mxu0
    %v121 = vadd.f32 %v55, %v120
    %v122 = vpop.f32.mrb[0].mxu0
    %v123 = vpop.f32.mrb[0].mxu0
    %v124 = vadd.f32 %v55, %v123
    %v125 = vpop.f32.mrb[0].mxu0
    %126 = vmatprep.mubr.bf16.mxu0 0
    %127 = vmatmul.mubr.bf16.gmra.mrb[0].mxu0 %v68
    %v128 = vpop.f32.mrb[0].mxu0
    %v129 = vadd.f32 %v55, %v128
    %v130 = vpop.f32.mrb[0].mxu0
    %v131 = vpop.f32.mrb[0].mxu0
    %v132 = vadd.f32 %v55, %v131
    %v133 = vpop.f32.mrb[0].mxu0
    %134 = vdwg.mxu0
    %135 = vst [vmem:[#allocation4] sm:$0xff] %v105
    %136 = vst [vmem:[#allocation4 + $0x8] sm:$0xff] %v108
    %137 = vst [vmem:[#allocation4 + $0x10] sm:$0xff] %v113
    %138 = vst [vmem:[#allocation4 + $0x18] sm:$0xff] %v116
    %139 = vst [vmem:[#allocation4 + $0x20] sm:$0xff] %v121
    %140 = vst [vmem:[#allocation4 + $0x28] sm:$0xff] %v124
    %141 = vst [vmem:[#allocation4 + $0x30] sm:$0xff] %v129
    %142 = vst [vmem:[#allocation4 + $0x38] sm:$0xff] %v132
    %v143 = vld [vmem:[%s4] sm:$0xff]
    %v144 = vld [vmem:[%s4 + $0x8] sm:$0xff]
    %v145 = vld [vmem:[%s4 + $0x10] sm:$0xff]
    %v146 = vld [vmem:[%s4 + $0x18] sm:$0xff]
    %v147 = vld [vmem:[%s6] sm:$0xff]
    %v148 = vld [vmem:[%s2] sm:$0xff]
    %149 = vst.msk [vmem:[#allocation2] sm:$0xff] %vm57, %v148
    %v150 = vld [vmem:[%s3] sm:$0xff]
    %151 = vst.msk [vmem:[#allocation3] sm:$0xff] %vm57, %v150
    %v152 = vlaneseq
    %v153 = vand.u32 %v152, 127
    %vm154 = vcmp.ge.s32.totalorder %v153, 64
    %vm155 = vcmp.lt.s32.totalorder %v153, 96
    %vm156 = vmand %vm154, %vm155
    %v157 = vsel %vm156, 2.0, 1.0
    %v158 = vld [vmem:[#allocation2] sm:$0xff]
    %v159 = vld [vmem:[#allocation3] sm:$0xff]
    %v160 = vld [vmem:[#allocation4] sm:$0xff]
    %v162 = vsel %vm57, %v158, 0
    %164 = vmatprep.subr.mxu0 0.0
    %165 = vmatpush1.msra.mxu0 %v143
    %166 = vmatprep.subr.mxu0 0.0
    %167 = vmatpush1.msra.mxu0 %v144
    %168 = vmatprep.subr.mxu0 0.0
    %169 = vmatpush1.msra.mxu0 %v145
    %170 = vmatprep.subr.mxu0 0.0
    %171 = vmatpush1.msra.mxu0 %v146
    %172 = vmatprep.subr.mxu0 0.0
    %173 = vmatpush1.msra.mxu0 0.0
    %174 = vmatprep.subr.mxu0 0.0
    %175 = vmatpush1.msra.mxu0 0.0
    %176 = vmatprep.subr.mxu0 0.0
    %177 = vmatpush1.msra.mxu0 0.0
    %178 = vmatprep.subr.mxu0 0.0
    %179 = vmatpush1.msra.mxu0 0.0
    %180 = vmatprep.subr.mxu0 0.0
    %181 = vmatpush1.msra.mxu0 0.0
    %182 = vmatprep.subr.mxu0 0.0
    %183 = vmatpush1.msra.mxu0 0.0
    %184 = vmatprep.subr.mxu0 0.0
    %185 = vmatpush1.msra.mxu0 0.0
    %186 = vmatprep.subr.mxu0 0.0
    %187 = vmatpush1.msra.mxu0 0.0
    %188 = vmatprep.subr.mxu0 0.0
    %189 = vmatpush1.msra.mxu0 0.0
    %190 = vmatprep.subr.mxu0 0.0
    %191 = vmatpush1.msra.mxu0 0.0
    %192 = vmatprep.subr.mxu0 0.0
    %193 = vmatpush1.msra.mxu0 0.0
    %194 = vmatprep.subr.mxu0 0.0
    %195 = vmatpush1.msra.mxu0 0.0
    %196 = vmatprep.subr.mxu0 0.0
    %197 = vmatpush1.msra.mxu0 0.0
    %198 = vmatprep.subr.mxu0 0.0
    %199 = vmatpush1.msra.mxu0 0.0
    %200 = vmatprep.subr.mxu0 0.0
    %201 = vmatpush1.msra.mxu0 0.0
    %202 = vmatprep.subr.mxu0 0.0
    %203 = vmatpush1.msra.mxu0 0.0
    %204 = vmatprep.subr.mxu0 0.0
    %205 = vmatpush1.msra.mxu0 0.0
    %206 = vmatprep.subr.mxu0 0.0
    %207 = vmatpush1.msra.mxu0 0.0
    %208 = vmatprep.subr.mxu0 0.0
    %209 = vmatpush1.msra.mxu0 0.0
    %210 = vmatprep.subr.mxu0 0.0
    %211 = vmatpush1.msra.mxu0 0.0
    %212 = vmatprep.subr.mxu0 0.0
    %213 = vmatpush1.msra.mxu0 0.0
    %214 = vmatprep.subr.mxu0 0.0
    %215 = vmatpush1.msra.mxu0 0.0
    %216 = vmatprep.subr.mxu0 0.0
    %217 = vmatpush1.msra.mxu0 0.0
    %218 = vmatprep.subr.mxu0 0.0
    %219 = vmatpush1.msra.mxu0 0.0
    %220 = vmatprep.subr.mxu0 0.0
    %221 = vmatpush1.msra.mxu0 0.0
    %222 = vmatprep.subr.mxu0 0.0
    %223 = vmatpush1.msra.mxu0 0.0
    %224 = vmatprep.subr.mxu0 0.0
    %225 = vmatpush1.msra.mxu0 0.0
    %226 = vmatprep.subr.mxu0 0.0
    %227 = vmatpush1.msra.mxu0 0.0
    %228 = vmatprep.mubr.f32.mxu0 0.0
    %229 = vmatmul.mubr.f32.gmra.mrb[0].mxu0 %v162
    %v230 = vpop.f32.mrb[0].mxu0
    %v231 = vadd.f32 0.0, %v230
    %v232 = vpop.f32.mrb[0].mxu0
    %233 = vdwg.mxu0
    %v234 = vadd.f32 %v160, %v231
    %v235 = vmul.f32 %v234, %v157
    %v236 = vxor.u32 %v235, 2147483648
    %v237 = vmul.f32 %v236, 1.442695
    %v238 = vpow.pop %v237
    %v239 = vadd.f32 %v238, 1.0
    %v240 = vrcp.pop %v239
    %v241 = vmul.f32 1.0, %v240
    %v242 = vmul.f32 %v241, 2.0
    %v243 = vsub.f32 %v242, 1.0
    %245 = vrot.lane.b32.xlu0 %v159, 32
    %v246 = vpop.permute.xlu0 %245
    %v248 = vmul.f32 %v241, %v246
    %250 = vrot.lane.b32.xlu0 %v243, 64
    %v251 = vpop.permute.xlu0 %250
    %v253 = vmul.f32 %v241, %v251
    %255 = vrot.lane.b32.xlu0 %v253, 32
    %v256 = vpop.permute.xlu0 %255
    %v258 = vadd.f32 %v248, %v256
    %v259 = vtanh.pop %v258
    %261 = vrot.lane.b32.xlu0 %v259, 64
    %v262 = vpop.permute.xlu0 %261
    %v264 = vmul.f32 %v241, %v262
    %vm265 = vcmp.gt.s32.totalorder %v147, 0
    %v266 = vsel %vm265, 1, 0
    %267 = vset.pattern.permute.xlu0 0
    %268 = vperm.xlu0 %267, %v266
    %v269 = vpop.permute.xlu0 %268
    %vm270 = vcmp.eq.s32.totalorder %v269, 1
    %271 = vrot.lane.b32.xlu0 %v158, 96
    %v272 = vpop.permute.xlu0 %271
    %v274 = vsel %vm270, %v264, %v272
    %276 = vrot.lane.b32.xlu0 %v274, 32
    %v277 = vpop.permute.xlu0 %276
    %279 = vst.msk [vmem:[#allocation2] sm:$0xff] %vm57, %v277
    %v280 = vsel %vm270, %v258, %v246
    %282 = vrot.lane.b32.xlu0 %v280, 96
    %v283 = vpop.permute.xlu0 %282
    %285 = vst.msk [vmem:[#allocation3] sm:$0xff] %vm57, %v283
    %v286 = vsel %vm270, %v264, 0.0
    %v287 = vld [vmem:[%s0] sm:$0xff]
    %289 = vrot.lane.b32.xlu0 %v287, 96
    %v290 = vpop.permute.xlu0 %289
    %v292 = vadd.f32 %v286, %v290
    %294 = vrot.lane.b32.xlu0 %v292, 32
    %v295 = vpop.permute.xlu0 %294
    %vm297 = vcmask 254976
    %298 = vst.msk [vmem:[#allocation5] sm:$0x3] %vm297, %v295
    %v299 = vld [vmem:[#allocation2] sm:$0xff]
    %v300 = vld [vmem:[#allocation3] sm:$0xff]
    %s301 = scalar_lea.vmem [#allocation4], 8
    %v302 = vld [vmem:[%s301] sm:$0xff]
    %v304 = vsel %vm57, %v299, 0
    %306 = vmatprep.subr.mxu0 0.0
    %307 = vmatpush1.msra.mxu0 %v143
    %308 = vmatprep.subr.mxu0 0.0
    %309 = vmatpush1.msra.mxu0 %v144
    %310 = vmatprep.subr.mxu0 0.0
    %311 = vmatpush1.msra.mxu0 %v145
    %312 = vmatprep.subr.mxu0 0.0
    %313 = vmatpush1.msra.mxu0 %v146
    %314 = vmatprep.subr.mxu0 0.0
    %315 = vmatpush1.msra.mxu0 0.0
    %316 = vmatprep.subr.mxu0 0.0
    %317 = vmatpush1.msra.mxu0 0.0
    %318 = vmatprep.subr.mxu0 0.0
    %319 = vmatpush1.msra.mxu0 0.0
    %320 = vmatprep.subr.mxu0 0.0
    %321 = vmatpush1.msra.mxu0 0.0
    %322 = vmatprep.subr.mxu0 0.0
    %323 = vmatpush1.msra.mxu0 0.0
    %324 = vmatprep.subr.mxu0 0.0
    %325 = vmatpush1.msra.mxu0 0.0
    %326 = vmatprep.subr.mxu0 0.0
    %327 = vmatpush1.msra.mxu0 0.0
    %328 = vmatprep.subr.mxu0 0.0
    %329 = vmatpush1.msra.mxu0 0.0
    %330 = vmatprep.subr.mxu0 0.0
    %331 = vmatpush1.msra.mxu0 0.0
    %332 = vmatprep.subr.mxu0 0.0
    %333 = vmatpush1.msra.mxu0 0.0
    %334 = vmatprep.subr.mxu0 0.0
    %335 = vmatpush1.msra.mxu0 0.0
    %336 = vmatprep.subr.mxu0 0.0
    %337 = vmatpush1.msra.mxu0 0.0
    %338 = vmatprep.subr.mxu0 0.0
    %339 = vmatpush1.msra.mxu0 0.0
    %340 = vmatprep.subr.mxu0 0.0
    %341 = vmatpush1.msra.mxu0 0.0
    %342 = vmatprep.subr.mxu0 0.0
    %343 = vmatpush1.msra.mxu0 0.0
    %344 = vmatprep.subr.mxu0 0.0
    %345 = vmatpush1.msra.mxu0 0.0
    %346 = vmatprep.subr.mxu0 0.0
    %347 = vmatpush1.msra.mxu0 0.0
    %348 = vmatprep.subr.mxu0 0.0
    %349 = vmatpush1.msra.mxu0 0.0
    %350 = vmatprep.subr.mxu0 0.0
    %351 = vmatpush1.msra.mxu0 0.0
    %352 = vmatprep.subr.mxu0 0.0
    %353 = vmatpush1.msra.mxu0 0.0
    %354 = vmatprep.subr.mxu0 0.0
    %355 = vmatpush1.msra.mxu0 0.0
    %356 = vmatprep.subr.mxu0 0.0
    %357 = vmatpush1.msra.mxu0 0.0
    %358 = vmatprep.subr.mxu0 0.0
    %359 = vmatpush1.msra.mxu0 0.0
    %360 = vmatprep.subr.mxu0 0.0
    %361 = vmatpush1.msra.mxu0 0.0
    %362 = vmatprep.subr.mxu0 0.0
    %363 = vmatpush1.msra.mxu0 0.0
    %364 = vmatprep.subr.mxu0 0.0
    %365 = vmatpush1.msra.mxu0 0.0
    %366 = vmatprep.subr.mxu0 0.0
    %367 = vmatpush1.msra.mxu0 0.0
    %368 = vmatprep.subr.mxu0 0.0
    %369 = vmatpush1.msra.mxu0 0.0
    %370 = vmatprep.mubr.f32.mxu0 0.0
    %371 = vmatmul.mubr.f32.gmra.mrb[0].mxu0 %v304
    %v372 = vpop.f32.mrb[0].mxu0
    %v373 = vadd.f32 0.0, %v372
    %v374 = vpop.f32.mrb[0].mxu0
    %375 = vdwg.mxu0
    %v376 = vadd.f32 %v302, %v373
    %v377 = vmul.f32 %v376, %v157
    %v378 = vxor.u32 %v377, 2147483648
    %v379 = vmul.f32 %v378, 1.442695
    %v380 = vpow.pop %v379
    %v381 = vadd.f32 %v380, 1.0
    %v382 = vrcp.pop %v381
    %v383 = vmul.f32 1.0, %v382
    %v384 = vmul.f32 %v383, 2.0
    %v385 = vsub.f32 %v384, 1.0
    %387 = vrot.lane.b32.xlu0 %v300, 32
    %v388 = vpop.permute.xlu0 %387
    %v390 = vmul.f32 %v383, %v388
    %392 = vrot.lane.b32.xlu0 %v385, 64
    %v393 = vpop.permute.xlu0 %392
    %v395 = vmul.f32 %v383, %v393
    %397 = vrot.lane.b32.xlu0 %v395, 32
    %v398 = vpop.permute.xlu0 %397
    %v400 = vadd.f32 %v390, %v398
    %v401 = vtanh.pop %v400
    %403 = vrot.lane.b32.xlu0 %v401, 64
    %v404 = vpop.permute.xlu0 %403
    %v406 = vmul.f32 %v383, %v404
    %vm407 = vcmp.gt.s32.totalorder %v147, 1
    %v408 = vsel %vm407, 1, 0
    %409 = vset.pattern.permute.xlu0 0
    %410 = vperm.xlu0 %409, %v408
    %v411 = vpop.permute.xlu0 %410
    %vm412 = vcmp.eq.s32.totalorder %v411, 1
    %413 = vrot.lane.b32.xlu0 %v299, 96
    %v414 = vpop.permute.xlu0 %413
    %v416 = vsel %vm412, %v406, %v414
    %418 = vrot.lane.b32.xlu0 %v416, 32
    %v419 = vpop.permute.xlu0 %418
    %421 = vst.msk [vmem:[#allocation2] sm:$0xff] %vm57, %v419
    %v422 = vsel %vm412, %v400, %v388
    %424 = vrot.lane.b32.xlu0 %v422, 96
    %v425 = vpop.permute.xlu0 %424
    %427 = vst.msk [vmem:[#allocation3] sm:$0xff] %vm57, %v425
    %v428 = vsel %vm412, %v406, 0.0
    %s429 = scalar_lea.vmem %s0, 8
    %v430 = vld [vmem:[%s429] sm:$0xff]
    %432 = vrot.lane.b32.xlu0 %v430, 96
    %v433 = vpop.permute.xlu0 %432
    %v435 = vadd.f32 %v428, %v433
    %437 = vrot.lane.b32.xlu0 %v435, 32
    %v438 = vpop.permute.xlu0 %437
    %s440 = scalar_lea.vmem [#allocation5], 2
    %441 = vst.msk [vmem:[%s440] sm:$0x3] %vm297, %v438
    %v442 = vld [vmem:[#allocation2] sm:$0xff]
    %v443 = vld [vmem:[#allocation3] sm:$0xff]
    %s444 = scalar_lea.vmem [#allocation4], 16
    %v445 = vld [vmem:[%s444] sm:$0xff]
    %v447 = vsel %vm57, %v442, 0
    %449 = vmatprep.subr.mxu0 0.0
    %450 = vmatpush1.msra.mxu0 %v143
    %451 = vmatprep.subr.mxu0 0.0
    %452 = vmatpush1.msra.mxu0 %v144
    %453 = vmatprep.subr.mxu0 0.0
    %454 = vmatpush1.msra.mxu0 %v145
    %455 = vmatprep.subr.mxu0 0.0
    %456 = vmatpush1.msra.mxu0 %v146
    %457 = vmatprep.subr.mxu0 0.0
    %458 = vmatpush1.msra.mxu0 0.0
    %459 = vmatprep.subr.mxu0 0.0
    %460 = vmatpush1.msra.mxu0 0.0
    %461 = vmatprep.subr.mxu0 0.0
    %462 = vmatpush1.msra.mxu0 0.0
    %463 = vmatprep.subr.mxu0 0.0
    %464 = vmatpush1.msra.mxu0 0.0
    %465 = vmatprep.subr.mxu0 0.0
    %466 = vmatpush1.msra.mxu0 0.0
    %467 = vmatprep.subr.mxu0 0.0
    %468 = vmatpush1.msra.mxu0 0.0
    %469 = vmatprep.subr.mxu0 0.0
    %470 = vmatpush1.msra.mxu0 0.0
    %471 = vmatprep.subr.mxu0 0.0
    %472 = vmatpush1.msra.mxu0 0.0
    %473 = vmatprep.subr.mxu0 0.0
    %474 = vmatpush1.msra.mxu0 0.0
    %475 = vmatprep.subr.mxu0 0.0
    %476 = vmatpush1.msra.mxu0 0.0
    %477 = vmatprep.subr.mxu0 0.0
    %478 = vmatpush1.msra.mxu0 0.0
    %479 = vmatprep.subr.mxu0 0.0
    %480 = vmatpush1.msra.mxu0 0.0
    %481 = vmatprep.subr.mxu0 0.0
    %482 = vmatpush1.msra.mxu0 0.0
    %483 = vmatprep.subr.mxu0 0.0
    %484 = vmatpush1.msra.mxu0 0.0
    %485 = vmatprep.subr.mxu0 0.0
    %486 = vmatpush1.msra.mxu0 0.0
    %487 = vmatprep.subr.mxu0 0.0
    %488 = vmatpush1.msra.mxu0 0.0
    %489 = vmatprep.subr.mxu0 0.0
    %490 = vmatpush1.msra.mxu0 0.0
    %491 = vmatprep.subr.mxu0 0.0
    %492 = vmatpush1.msra.mxu0 0.0
    %493 = vmatprep.subr.mxu0 0.0
    %494 = vmatpush1.msra.mxu0 0.0
    %495 = vmatprep.subr.mxu0 0.0
    %496 = vmatpush1.msra.mxu0 0.0
    %497 = vmatprep.subr.mxu0 0.0
    %498 = vmatpush1.msra.mxu0 0.0
    %499 = vmatprep.subr.mxu0 0.0
    %500 = vmatpush1.msra.mxu0 0.0
    %501 = vmatprep.subr.mxu0 0.0
    %502 = vmatpush1.msra.mxu0 0.0
    %503 = vmatprep.subr.mxu0 0.0
    %504 = vmatpush1.msra.mxu0 0.0
    %505 = vmatprep.subr.mxu0 0.0
    %506 = vmatpush1.msra.mxu0 0.0
    %507 = vmatprep.subr.mxu0 0.0
    %508 = vmatpush1.msra.mxu0 0.0
    %509 = vmatprep.subr.mxu0 0.0
    %510 = vmatpush1.msra.mxu0 0.0
    %511 = vmatprep.subr.mxu0 0.0
    %512 = vmatpush1.msra.mxu0 0.0
    %513 = vmatprep.mubr.f32.mxu0 0.0
    %514 = vmatmul.mubr.f32.gmra.mrb[0].mxu0 %v447
    %v515 = vpop.f32.mrb[0].mxu0
    %v516 = vadd.f32 0.0, %v515
    %v517 = vpop.f32.mrb[0].mxu0
    %518 = vdwg.mxu0
    %v519 = vadd.f32 %v445, %v516
    %v520 = vmul.f32 %v519, %v157
    %v521 = vxor.u32 %v520, 2147483648
    %v522 = vmul.f32 %v521, 1.442695
    %v523 = vpow.pop %v522
    %v524 = vadd.f32 %v523, 1.0
    %v525 = vrcp.pop %v524
    %v526 = vmul.f32 1.0, %v525
    %v527 = vmul.f32 %v526, 2.0
    %v528 = vsub.f32 %v527, 1.0
    %530 = vrot.lane.b32.xlu0 %v443, 32
    %v531 = vpop.permute.xlu0 %530
    %v533 = vmul.f32 %v526, %v531
    %535 = vrot.lane.b32.xlu0 %v528, 64
    %v536 = vpop.permute.xlu0 %535
    %v538 = vmul.f32 %v526, %v536
    %540 = vrot.lane.b32.xlu0 %v538, 32
    %v541 = vpop.permute.xlu0 %540
    %v543 = vadd.f32 %v533, %v541
    %v544 = vtanh.pop %v543
    %546 = vrot.lane.b32.xlu0 %v544, 64
    %v547 = vpop.permute.xlu0 %546
    %v549 = vmul.f32 %v526, %v547
    %vm550 = vcmp.gt.s32.totalorder %v147, 2
    %v551 = vsel %vm550, 1, 0
    %552 = vset.pattern.permute.xlu0 0
    %553 = vperm.xlu0 %552, %v551
    %v554 = vpop.permute.xlu0 %553
    %vm555 = vcmp.eq.s32.totalorder %v554, 1
    %556 = vrot.lane.b32.xlu0 %v442, 96
    %v557 = vpop.permute.xlu0 %556
    %v559 = vsel %vm555, %v549, %v557
    %561 = vrot.lane.b32.xlu0 %v559, 32
    %v562 = vpop.permute.xlu0 %561
    %564 = vst.msk [vmem:[#allocation2] sm:$0xff] %vm57, %v562
    %v565 = vsel %vm555, %v543, %v531
    %567 = vrot.lane.b32.xlu0 %v565, 96
    %v568 = vpop.permute.xlu0 %567
    %570 = vst.msk [vmem:[#allocation3] sm:$0xff] %vm57, %v568
    %v571 = vsel %vm555, %v549, 0.0
    %s572 = scalar_lea.vmem %s0, 16
    %v573 = vld [vmem:[%s572] sm:$0xff]
    %575 = vrot.lane.b32.xlu0 %v573, 96
    %v576 = vpop.permute.xlu0 %575
    %v578 = vadd.f32 %v571, %v576
    %580 = vrot.lane.b32.xlu0 %v578, 32
    %v581 = vpop.permute.xlu0 %580
    %s583 = scalar_lea.vmem [#allocation5], 4
    %584 = vst.msk [vmem:[%s583] sm:$0x3] %vm297, %v581
    %v585 = vld [vmem:[#allocation2] sm:$0xff]
    %v586 = vld [vmem:[#allocation3] sm:$0xff]
    %s587 = scalar_lea.vmem [#allocation4], 24
    %v588 = vld [vmem:[%s587] sm:$0xff]
    %v590 = vsel %vm57, %v585, 0
    %592 = vmatprep.subr.mxu0 0.0
    %593 = vmatpush1.msra.mxu0 %v143
    %594 = vmatprep.subr.mxu0 0.0
    %595 = vmatpush1.msra.mxu0 %v144
    %596 = vmatprep.subr.mxu0 0.0
    %597 = vmatpush1.msra.mxu0 %v145
    %598 = vmatprep.subr.mxu0 0.0
    %599 = vmatpush1.msra.mxu0 %v146
    %600 = vmatprep.subr.mxu0 0.0
    %601 = vmatpush1.msra.mxu0 0.0
    %602 = vmatprep.subr.mxu0 0.0
    %603 = vmatpush1.msra.mxu0 0.0
    %604 = vmatprep.subr.mxu0 0.0
    %605 = vmatpush1.msra.mxu0 0.0
    %606 = vmatprep.subr.mxu0 0.0
    %607 = vmatpush1.msra.mxu0 0.0
    %608 = vmatprep.subr.mxu0 0.0
    %609 = vmatpush1.msra.mxu0 0.0
    %610 = vmatprep.subr.mxu0 0.0
    %611 = vmatpush1.msra.mxu0 0.0
    %612 = vmatprep.subr.mxu0 0.0
    %613 = vmatpush1.msra.mxu0 0.0
    %614 = vmatprep.subr.mxu0 0.0
    %615 = vmatpush1.msra.mxu0 0.0
    %616 = vmatprep.subr.mxu0 0.0
    %617 = vmatpush1.msra.mxu0 0.0
    %618 = vmatprep.subr.mxu0 0.0
    %619 = vmatpush1.msra.mxu0 0.0
    %620 = vmatprep.subr.mxu0 0.0
    %621 = vmatpush1.msra.mxu0 0.0
    %622 = vmatprep.subr.mxu0 0.0
    %623 = vmatpush1.msra.mxu0 0.0
    %624 = vmatprep.subr.mxu0 0.0
    %625 = vmatpush1.msra.mxu0 0.0
    %626 = vmatprep.subr.mxu0 0.0
    %627 = vmatpush1.msra.mxu0 0.0
    %628 = vmatprep.subr.mxu0 0.0
    %629 = vmatpush1.msra.mxu0 0.0
    %630 = vmatprep.subr.mxu0 0.0
    %631 = vmatpush1.msra.mxu0 0.0
    %632 = vmatprep.subr.mxu0 0.0
    %633 = vmatpush1.msra.mxu0 0.0
    %634 = vmatprep.subr.mxu0 0.0
    %635 = vmatpush1.msra.mxu0 0.0
    %636 = vmatprep.subr.mxu0 0.0
    %637 = vmatpush1.msra.mxu0 0.0
    %638 = vmatprep.subr.mxu0 0.0
    %639 = vmatpush1.msra.mxu0 0.0
    %640 = vmatprep.subr.mxu0 0.0
    %641 = vmatpush1.msra.mxu0 0.0
    %642 = vmatprep.subr.mxu0 0.0
    %643 = vmatpush1.msra.mxu0 0.0
    %644 = vmatprep.subr.mxu0 0.0
    %645 = vmatpush1.msra.mxu0 0.0
    %646 = vmatprep.subr.mxu0 0.0
    %647 = vmatpush1.msra.mxu0 0.0
    %648 = vmatprep.subr.mxu0 0.0
    %649 = vmatpush1.msra.mxu0 0.0
    %650 = vmatprep.subr.mxu0 0.0
    %651 = vmatpush1.msra.mxu0 0.0
    %652 = vmatprep.subr.mxu0 0.0
    %653 = vmatpush1.msra.mxu0 0.0
    %654 = vmatprep.subr.mxu0 0.0
    %655 = vmatpush1.msra.mxu0 0.0
    %656 = vmatprep.mubr.f32.mxu0 0.0
    %657 = vmatmul.mubr.f32.gmra.mrb[0].mxu0 %v590
    %v658 = vpop.f32.mrb[0].mxu0
    %v659 = vadd.f32 0.0, %v658
    %v660 = vpop.f32.mrb[0].mxu0
    %661 = vdwg.mxu0
    %v662 = vadd.f32 %v588, %v659
    %v663 = vmul.f32 %v662, %v157
    %v664 = vxor.u32 %v663, 2147483648
    %v665 = vmul.f32 %v664, 1.442695
    %v666 = vpow.pop %v665
    %v667 = vadd.f32 %v666, 1.0
    %v668 = vrcp.pop %v667
    %v669 = vmul.f32 1.0, %v668
    %v670 = vmul.f32 %v669, 2.0
    %v671 = vsub.f32 %v670, 1.0
    %673 = vrot.lane.b32.xlu0 %v586, 32
    %v674 = vpop.permute.xlu0 %673
    %v676 = vmul.f32 %v669, %v674
    %678 = vrot.lane.b32.xlu0 %v671, 64
    %v679 = vpop.permute.xlu0 %678
    %v681 = vmul.f32 %v669, %v679
    %683 = vrot.lane.b32.xlu0 %v681, 32
    %v684 = vpop.permute.xlu0 %683
    %v686 = vadd.f32 %v676, %v684
    %v687 = vtanh.pop %v686
    %689 = vrot.lane.b32.xlu0 %v687, 64
    %v690 = vpop.permute.xlu0 %689
    %v692 = vmul.f32 %v669, %v690
    %vm693 = vcmp.gt.s32.totalorder %v147, 3
    %v694 = vsel %vm693, 1, 0
    %695 = vset.pattern.permute.xlu0 0
    %696 = vperm.xlu0 %695, %v694
    %v697 = vpop.permute.xlu0 %696
    %vm698 = vcmp.eq.s32.totalorder %v697, 1
    %699 = vrot.lane.b32.xlu0 %v585, 96
    %v700 = vpop.permute.xlu0 %699
    %v702 = vsel %vm698, %v692, %v700
    %704 = vrot.lane.b32.xlu0 %v702, 32
    %v705 = vpop.permute.xlu0 %704
    %707 = vst.msk [vmem:[#allocation2] sm:$0xff] %vm57, %v705
    %v708 = vsel %vm698, %v686, %v674
    %710 = vrot.lane.b32.xlu0 %v708, 96
    %v711 = vpop.permute.xlu0 %710
    %713 = vst.msk [vmem:[#allocation3] sm:$0xff] %vm57, %v711
    %v714 = vsel %vm698, %v692, 0.0
    %s715 = scalar_lea.vmem %s0, 24
    %v716 = vld [vmem:[%s715] sm:$0xff]
    %718 = vrot.lane.b32.xlu0 %v716, 96
    %v719 = vpop.permute.xlu0 %718
    %v721 = vadd.f32 %v714, %v719
    %723 = vrot.lane.b32.xlu0 %v721, 32
    %v724 = vpop.permute.xlu0 %723
    %s726 = scalar_lea.vmem [#allocation5], 6
    %727 = vst.msk [vmem:[%s726] sm:$0x3] %vm297, %v724
    %v728 = vld [vmem:[#allocation2] sm:$0xff]
    %v729 = vld [vmem:[#allocation3] sm:$0xff]
    %s730 = scalar_lea.vmem [#allocation4], 32
    %v731 = vld [vmem:[%s730] sm:$0xff]
    %v733 = vsel %vm57, %v728, 0
    %735 = vmatprep.subr.mxu0 0.0
    %736 = vmatpush1.msra.mxu0 %v143
    %737 = vmatprep.subr.mxu0 0.0
    %738 = vmatpush1.msra.mxu0 %v144
    %739 = vmatprep.subr.mxu0 0.0
    %740 = vmatpush1.msra.mxu0 %v145
    %741 = vmatprep.subr.mxu0 0.0
    %742 = vmatpush1.msra.mxu0 %v146
    %743 = vmatprep.subr.mxu0 0.0
    %744 = vmatpush1.msra.mxu0 0.0
    %745 = vmatprep.subr.mxu0 0.0
    %746 = vmatpush1.msra.mxu0 0.0
    %747 = vmatprep.subr.mxu0 0.0
    %748 = vmatpush1.msra.mxu0 0.0
    %749 = vmatprep.subr.mxu0 0.0
    %750 = vmatpush1.msra.mxu0 0.0
    %751 = vmatprep.subr.mxu0 0.0
    %752 = vmatpush1.msra.mxu0 0.0
    %753 = vmatprep.subr.mxu0 0.0
    %754 = vmatpush1.msra.mxu0 0.0
    %755 = vmatprep.subr.mxu0 0.0
    %756 = vmatpush1.msra.mxu0 0.0
    %757 = vmatprep.subr.mxu0 0.0
    %758 = vmatpush1.msra.mxu0 0.0
    %759 = vmatprep.subr.mxu0 0.0
    %760 = vmatpush1.msra.mxu0 0.0
    %761 = vmatprep.subr.mxu0 0.0
    %762 = vmatpush1.msra.mxu0 0.0
    %763 = vmatprep.subr.mxu0 0.0
    %764 = vmatpush1.msra.mxu0 0.0
    %765 = vmatprep.subr.mxu0 0.0
    %766 = vmatpush1.msra.mxu0 0.0
    %767 = vmatprep.subr.mxu0 0.0
    %768 = vmatpush1.msra.mxu0 0.0
    %769 = vmatprep.subr.mxu0 0.0
    %770 = vmatpush1.msra.mxu0 0.0
    %771 = vmatprep.subr.mxu0 0.0
    %772 = vmatpush1.msra.mxu0 0.0
    %773 = vmatprep.subr.mxu0 0.0
    %774 = vmatpush1.msra.mxu0 0.0
    %775 = vmatprep.subr.mxu0 0.0
    %776 = vmatpush1.msra.mxu0 0.0
    %777 = vmatprep.subr.mxu0 0.0
    %778 = vmatpush1.msra.mxu0 0.0
    %779 = vmatprep.subr.mxu0 0.0
    %780 = vmatpush1.msra.mxu0 0.0
    %781 = vmatprep.subr.mxu0 0.0
    %782 = vmatpush1.msra.mxu0 0.0
    %783 = vmatprep.subr.mxu0 0.0
    %784 = vmatpush1.msra.mxu0 0.0
    %785 = vmatprep.subr.mxu0 0.0
    %786 = vmatpush1.msra.mxu0 0.0
    %787 = vmatprep.subr.mxu0 0.0
    %788 = vmatpush1.msra.mxu0 0.0
    %789 = vmatprep.subr.mxu0 0.0
    %790 = vmatpush1.msra.mxu0 0.0
    %791 = vmatprep.subr.mxu0 0.0
    %792 = vmatpush1.msra.mxu0 0.0
    %793 = vmatprep.subr.mxu0 0.0
    %794 = vmatpush1.msra.mxu0 0.0
    %795 = vmatprep.subr.mxu0 0.0
    %796 = vmatpush1.msra.mxu0 0.0
    %797 = vmatprep.subr.mxu0 0.0
    %798 = vmatpush1.msra.mxu0 0.0
    %799 = vmatprep.mubr.f32.mxu0 0.0
    %800 = vmatmul.mubr.f32.gmra.mrb[0].mxu0 %v733
    %v801 = vpop.f32.mrb[0].mxu0
    %v802 = vadd.f32 0.0, %v801
    %v803 = vpop.f32.mrb[0].mxu0
    %804 = vdwg.mxu0
    %v805 = vadd.f32 %v731, %v802
    %v806 = vmul.f32 %v805, %v157
    %v807 = vxor.u32 %v806, 2147483648
    %v808 = vmul.f32 %v807, 1.442695
    %v809 = vpow.pop %v808
    %v810 = vadd.f32 %v809, 1.0
    %v811 = vrcp.pop %v810
    %v812 = vmul.f32 1.0, %v811
    %v813 = vmul.f32 %v812, 2.0
    %v814 = vsub.f32 %v813, 1.0
    %816 = vrot.lane.b32.xlu0 %v729, 32
    %v817 = vpop.permute.xlu0 %816
    %v819 = vmul.f32 %v812, %v817
    %821 = vrot.lane.b32.xlu0 %v814, 64
    %v822 = vpop.permute.xlu0 %821
    %v824 = vmul.f32 %v812, %v822
    %826 = vrot.lane.b32.xlu0 %v824, 32
    %v827 = vpop.permute.xlu0 %826
    %v829 = vadd.f32 %v819, %v827
    %v830 = vtanh.pop %v829
    %832 = vrot.lane.b32.xlu0 %v830, 64
    %v833 = vpop.permute.xlu0 %832
    %v835 = vmul.f32 %v812, %v833
    %vm836 = vcmp.gt.s32.totalorder %v147, 4
    %v837 = vsel %vm836, 1, 0
    %838 = vset.pattern.permute.xlu0 0
    %839 = vperm.xlu0 %838, %v837
    %v840 = vpop.permute.xlu0 %839
    %vm841 = vcmp.eq.s32.totalorder %v840, 1
    %842 = vrot.lane.b32.xlu0 %v728, 96
    %v843 = vpop.permute.xlu0 %842
    %v845 = vsel %vm841, %v835, %v843
    %847 = vrot.lane.b32.xlu0 %v845, 32
    %v848 = vpop.permute.xlu0 %847
    %850 = vst.msk [vmem:[#allocation2] sm:$0xff] %vm57, %v848
    %v851 = vsel %vm841, %v829, %v817
    %853 = vrot.lane.b32.xlu0 %v851, 96
    %v854 = vpop.permute.xlu0 %853
    %856 = vst.msk [vmem:[#allocation3] sm:$0xff] %vm57, %v854
    %v857 = vsel %vm841, %v835, 0.0
    %s858 = scalar_lea.vmem %s0, 32
    %v859 = vld [vmem:[%s858] sm:$0xff]
    %861 = vrot.lane.b32.xlu0 %v859, 96
    %v862 = vpop.permute.xlu0 %861
    %v864 = vadd.f32 %v857, %v862
    %866 = vrot.lane.b32.xlu0 %v864, 32
    %v867 = vpop.permute.xlu0 %866
    %s869 = scalar_lea.vmem [#allocation5], 8
    %870 = vst.msk [vmem:[%s869] sm:$0x3] %vm297, %v867
    %v871 = vld [vmem:[#allocation2] sm:$0xff]
    %v872 = vld [vmem:[#allocation3] sm:$0xff]
    %s873 = scalar_lea.vmem [#allocation4], 40
    %v874 = vld [vmem:[%s873] sm:$0xff]
    %v876 = vsel %vm57, %v871, 0
    %878 = vmatprep.subr.mxu0 0.0
    %879 = vmatpush1.msra.mxu0 %v143
    %880 = vmatprep.subr.mxu0 0.0
    %881 = vmatpush1.msra.mxu0 %v144
    %882 = vmatprep.subr.mxu0 0.0
    %883 = vmatpush1.msra.mxu0 %v145
    %884 = vmatprep.subr.mxu0 0.0
    %885 = vmatpush1.msra.mxu0 %v146
    %886 = vmatprep.subr.mxu0 0.0
    %887 = vmatpush1.msra.mxu0 0.0
    %888 = vmatprep.subr.mxu0 0.0
    %889 = vmatpush1.msra.mxu0 0.0
    %890 = vmatprep.subr.mxu0 0.0
    %891 = vmatpush1.msra.mxu0 0.0
    %892 = vmatprep.subr.mxu0 0.0
    %893 = vmatpush1.msra.mxu0 0.0
    %894 = vmatprep.subr.mxu0 0.0
    %895 = vmatpush1.msra.mxu0 0.0
    %896 = vmatprep.subr.mxu0 0.0
    %897 = vmatpush1.msra.mxu0 0.0
    %898 = vmatprep.subr.mxu0 0.0
    %899 = vmatpush1.msra.mxu0 0.0
    %900 = vmatprep.subr.mxu0 0.0
    %901 = vmatpush1.msra.mxu0 0.0
    %902 = vmatprep.subr.mxu0 0.0
    %903 = vmatpush1.msra.mxu0 0.0
    %904 = vmatprep.subr.mxu0 0.0
    %905 = vmatpush1.msra.mxu0 0.0
    %906 = vmatprep.subr.mxu0 0.0
    %907 = vmatpush1.msra.mxu0 0.0
    %908 = vmatprep.subr.mxu0 0.0
    %909 = vmatpush1.msra.mxu0 0.0
    %910 = vmatprep.subr.mxu0 0.0
    %911 = vmatpush1.msra.mxu0 0.0
    %912 = vmatprep.subr.mxu0 0.0
    %913 = vmatpush1.msra.mxu0 0.0
    %914 = vmatprep.subr.mxu0 0.0
    %915 = vmatpush1.msra.mxu0 0.0
    %916 = vmatprep.subr.mxu0 0.0
    %917 = vmatpush1.msra.mxu0 0.0
    %918 = vmatprep.subr.mxu0 0.0
    %919 = vmatpush1.msra.mxu0 0.0
    %920 = vmatprep.subr.mxu0 0.0
    %921 = vmatpush1.msra.mxu0 0.0
    %922 = vmatprep.subr.mxu0 0.0
    %923 = vmatpush1.msra.mxu0 0.0
    %924 = vmatprep.subr.mxu0 0.0
    %925 = vmatpush1.msra.mxu0 0.0
    %926 = vmatprep.subr.mxu0 0.0
    %927 = vmatpush1.msra.mxu0 0.0
    %928 = vmatprep.subr.mxu0 0.0
    %929 = vmatpush1.msra.mxu0 0.0
    %930 = vmatprep.subr.mxu0 0.0
    %931 = vmatpush1.msra.mxu0 0.0
    %932 = vmatprep.subr.mxu0 0.0
    %933 = vmatpush1.msra.mxu0 0.0
    %934 = vmatprep.subr.mxu0 0.0
    %935 = vmatpush1.msra.mxu0 0.0
    %936 = vmatprep.subr.mxu0 0.0
    %937 = vmatpush1.msra.mxu0 0.0
    %938 = vmatprep.subr.mxu0 0.0
    %939 = vmatpush1.msra.mxu0 0.0
    %940 = vmatprep.subr.mxu0 0.0
    %941 = vmatpush1.msra.mxu0 0.0
    %942 = vmatprep.mubr.f32.mxu0 0.0
    %943 = vmatmul.mubr.f32.gmra.mrb[0].mxu0 %v876
    %v944 = vpop.f32.mrb[0].mxu0
    %v945 = vadd.f32 0.0, %v944
    %v946 = vpop.f32.mrb[0].mxu0
    %947 = vdwg.mxu0
    %v948 = vadd.f32 %v874, %v945
    %v949 = vmul.f32 %v948, %v157
    %v950 = vxor.u32 %v949, 2147483648
    %v951 = vmul.f32 %v950, 1.442695
    %v952 = vpow.pop %v951
    %v953 = vadd.f32 %v952, 1.0
    %v954 = vrcp.pop %v953
    %v955 = vmul.f32 1.0, %v954
    %v956 = vmul.f32 %v955, 2.0
    %v957 = vsub.f32 %v956, 1.0
    %959 = vrot.lane.b32.xlu0 %v872, 32
    %v960 = vpop.permute.xlu0 %959
    %v962 = vmul.f32 %v955, %v960
    %964 = vrot.lane.b32.xlu0 %v957, 64
    %v965 = vpop.permute.xlu0 %964
    %v967 = vmul.f32 %v955, %v965
    %969 = vrot.lane.b32.xlu0 %v967, 32
    %v970 = vpop.permute.xlu0 %969
    %v972 = vadd.f32 %v962, %v970
    %v973 = vtanh.pop %v972
    %975 = vrot.lane.b32.xlu0 %v973, 64
    %v976 = vpop.permute.xlu0 %975
    %v978 = vmul.f32 %v955, %v976
    %vm979 = vcmp.gt.s32.totalorder %v147, 5
    %v980 = vsel %vm979, 1, 0
    %981 = vset.pattern.permute.xlu0 0
    %982 = vperm.xlu0 %981, %v980
    %v983 = vpop.permute.xlu0 %982
    %vm984 = vcmp.eq.s32.totalorder %v983, 1
    %985 = vrot.lane.b32.xlu0 %v871, 96
    %v986 = vpop.permute.xlu0 %985
    %v988 = vsel %vm984, %v978, %v986
    %990 = vrot.lane.b32.xlu0 %v988, 32
    %v991 = vpop.permute.xlu0 %990
    %993 = vst.msk [vmem:[#allocation2] sm:$0xff] %vm57, %v991
    %v994 = vsel %vm984, %v972, %v960
    %996 = vrot.lane.b32.xlu0 %v994, 96
    %v997 = vpop.permute.xlu0 %996
    %999 = vst.msk [vmem:[#allocation3] sm:$0xff] %vm57, %v997
    %v1000 = vsel %vm984, %v978, 0.0
    %s1001 = scalar_lea.vmem %s0, 40
    %v1002 = vld [vmem:[%s1001] sm:$0xff]
    %1004 = vrot.lane.b32.xlu0 %v1002, 96
    %v1005 = vpop.permute.xlu0 %1004
    %v1007 = vadd.f32 %v1000, %v1005
    %1009 = vrot.lane.b32.xlu0 %v1007, 32
    %v1010 = vpop.permute.xlu0 %1009
    %s1012 = scalar_lea.vmem [#allocation5], 10
    %1013 = vst.msk [vmem:[%s1012] sm:$0x3] %vm297, %v1010
    %v1014 = vld [vmem:[#allocation2] sm:$0xff]
    %v1015 = vld [vmem:[#allocation3] sm:$0xff]
    %s1016 = scalar_lea.vmem [#allocation4], 48
    %v1017 = vld [vmem:[%s1016] sm:$0xff]
    %v1019 = vsel %vm57, %v1014, 0
    %1021 = vmatprep.subr.mxu0 0.0
    %1022 = vmatpush1.msra.mxu0 %v143
    %1023 = vmatprep.subr.mxu0 0.0
    %1024 = vmatpush1.msra.mxu0 %v144
    %1025 = vmatprep.subr.mxu0 0.0
    %1026 = vmatpush1.msra.mxu0 %v145
    %1027 = vmatprep.subr.mxu0 0.0
    %1028 = vmatpush1.msra.mxu0 %v146
    %1029 = vmatprep.subr.mxu0 0.0
    %1030 = vmatpush1.msra.mxu0 0.0
    %1031 = vmatprep.subr.mxu0 0.0
    %1032 = vmatpush1.msra.mxu0 0.0
    %1033 = vmatprep.subr.mxu0 0.0
    %1034 = vmatpush1.msra.mxu0 0.0
    %1035 = vmatprep.subr.mxu0 0.0
    %1036 = vmatpush1.msra.mxu0 0.0
    %1037 = vmatprep.subr.mxu0 0.0
    %1038 = vmatpush1.msra.mxu0 0.0
    %1039 = vmatprep.subr.mxu0 0.0
    %1040 = vmatpush1.msra.mxu0 0.0
    %1041 = vmatprep.subr.mxu0 0.0
    %1042 = vmatpush1.msra.mxu0 0.0
    %1043 = vmatprep.subr.mxu0 0.0
    %1044 = vmatpush1.msra.mxu0 0.0
    %1045 = vmatprep.subr.mxu0 0.0
    %1046 = vmatpush1.msra.mxu0 0.0
    %1047 = vmatprep.subr.mxu0 0.0
    %1048 = vmatpush1.msra.mxu0 0.0
    %1049 = vmatprep.subr.mxu0 0.0
    %1050 = vmatpush1.msra.mxu0 0.0
    %1051 = vmatprep.subr.mxu0 0.0
    %1052 = vmatpush1.msra.mxu0 0.0
    %1053 = vmatprep.subr.mxu0 0.0
    %1054 = vmatpush1.msra.mxu0 0.0
    %1055 = vmatprep.subr.mxu0 0.0
    %1056 = vmatpush1.msra.mxu0 0.0
    %1057 = vmatprep.subr.mxu0 0.0
    %1058 = vmatpush1.msra.mxu0 0.0
    %1059 = vmatprep.subr.mxu0 0.0
    %1060 = vmatpush1.msra.mxu0 0.0
    %1061 = vmatprep.subr.mxu0 0.0
    %1062 = vmatpush1.msra.mxu0 0.0
    %1063 = vmatprep.subr.mxu0 0.0
    %1064 = vmatpush1.msra.mxu0 0.0
    %1065 = vmatprep.subr.mxu0 0.0
    %1066 = vmatpush1.msra.mxu0 0.0
    %1067 = vmatprep.subr.mxu0 0.0
    %1068 = vmatpush1.msra.mxu0 0.0
    %1069 = vmatprep.subr.mxu0 0.0
    %1070 = vmatpush1.msra.mxu0 0.0
    %1071 = vmatprep.subr.mxu0 0.0
    %1072 = vmatpush1.msra.mxu0 0.0
    %1073 = vmatprep.subr.mxu0 0.0
    %1074 = vmatpush1.msra.mxu0 0.0
    %1075 = vmatprep.subr.mxu0 0.0
    %1076 = vmatpush1.msra.mxu0 0.0
    %1077 = vmatprep.subr.mxu0 0.0
    %1078 = vmatpush1.msra.mxu0 0.0
    %1079 = vmatprep.subr.mxu0 0.0
    %1080 = vmatpush1.msra.mxu0 0.0
    %1081 = vmatprep.subr.mxu0 0.0
    %1082 = vmatpush1.msra.mxu0 0.0
    %1083 = vmatprep.subr.mxu0 0.0
    %1084 = vmatpush1.msra.mxu0 0.0
    %1085 = vmatprep.mubr.f32.mxu0 0.0
    %1086 = vmatmul.mubr.f32.gmra.mrb[0].mxu0 %v1019
    %v1087 = vpop.f32.mrb[0].mxu0
    %v1088 = vadd.f32 0.0, %v1087
    %v1089 = vpop.f32.mrb[0].mxu0
    %1090 = vdwg.mxu0
    %v1091 = vadd.f32 %v1017, %v1088
    %v1092 = vmul.f32 %v1091, %v157
    %v1093 = vxor.u32 %v1092, 2147483648
    %v1094 = vmul.f32 %v1093, 1.442695
    %v1095 = vpow.pop %v1094
    %v1096 = vadd.f32 %v1095, 1.0
    %v1097 = vrcp.pop %v1096
    %v1098 = vmul.f32 1.0, %v1097
    %v1099 = vmul.f32 %v1098, 2.0
    %v1100 = vsub.f32 %v1099, 1.0
    %1102 = vrot.lane.b32.xlu0 %v1015, 32
    %v1103 = vpop.permute.xlu0 %1102
    %v1105 = vmul.f32 %v1098, %v1103
    %1107 = vrot.lane.b32.xlu0 %v1100, 64
    %v1108 = vpop.permute.xlu0 %1107
    %v1110 = vmul.f32 %v1098, %v1108
    %1112 = vrot.lane.b32.xlu0 %v1110, 32
    %v1113 = vpop.permute.xlu0 %1112
    %v1115 = vadd.f32 %v1105, %v1113
    %v1116 = vtanh.pop %v1115
    %1118 = vrot.lane.b32.xlu0 %v1116, 64
    %v1119 = vpop.permute.xlu0 %1118
    %v1121 = vmul.f32 %v1098, %v1119
    %vm1122 = vcmp.gt.s32.totalorder %v147, 6
    %v1123 = vsel %vm1122, 1, 0
    %1124 = vset.pattern.permute.xlu0 0
    %1125 = vperm.xlu0 %1124, %v1123
    %v1126 = vpop.permute.xlu0 %1125
    %vm1127 = vcmp.eq.s32.totalorder %v1126, 1
    %1128 = vrot.lane.b32.xlu0 %v1014, 96
    %v1129 = vpop.permute.xlu0 %1128
    %v1131 = vsel %vm1127, %v1121, %v1129
    %1133 = vrot.lane.b32.xlu0 %v1131, 32
    %v1134 = vpop.permute.xlu0 %1133
    %1136 = vst.msk [vmem:[#allocation2] sm:$0xff] %vm57, %v1134
    %v1137 = vsel %vm1127, %v1115, %v1103
    %1139 = vrot.lane.b32.xlu0 %v1137, 96
    %v1140 = vpop.permute.xlu0 %1139
    %1142 = vst.msk [vmem:[#allocation3] sm:$0xff] %vm57, %v1140
    %v1143 = vsel %vm1127, %v1121, 0.0
    %s1144 = scalar_lea.vmem %s0, 48
    %v1145 = vld [vmem:[%s1144] sm:$0xff]
    %1147 = vrot.lane.b32.xlu0 %v1145, 96
    %v1148 = vpop.permute.xlu0 %1147
    %v1150 = vadd.f32 %v1143, %v1148
    %1152 = vrot.lane.b32.xlu0 %v1150, 32
    %v1153 = vpop.permute.xlu0 %1152
    %s1155 = scalar_lea.vmem [#allocation5], 12
    %1156 = vst.msk [vmem:[%s1155] sm:$0x3] %vm297, %v1153
    %v1157 = vld [vmem:[#allocation2] sm:$0xff]
    %v1158 = vld [vmem:[#allocation3] sm:$0xff]
    %s1159 = scalar_lea.vmem [#allocation4], 56
    %v1160 = vld [vmem:[%s1159] sm:$0xff]
    %v1162 = vsel %vm57, %v1157, 0
    %1164 = vmatprep.subr.mxu0 0.0
    %1165 = vmatpush1.msra.mxu0 %v143
    %1166 = vmatprep.subr.mxu0 0.0
    %1167 = vmatpush1.msra.mxu0 %v144
    %1168 = vmatprep.subr.mxu0 0.0
    %1169 = vmatpush1.msra.mxu0 %v145
    %1170 = vmatprep.subr.mxu0 0.0
    %1171 = vmatpush1.msra.mxu0 %v146
    %1172 = vmatprep.subr.mxu0 0.0
    %1173 = vmatpush1.msra.mxu0 0.0
    %1174 = vmatprep.subr.mxu0 0.0
    %1175 = vmatpush1.msra.mxu0 0.0
    %1176 = vmatprep.subr.mxu0 0.0
    %1177 = vmatpush1.msra.mxu0 0.0
    %1178 = vmatprep.subr.mxu0 0.0
    %1179 = vmatpush1.msra.mxu0 0.0
    %1180 = vmatprep.subr.mxu0 0.0
    %1181 = vmatpush1.msra.mxu0 0.0
    %1182 = vmatprep.subr.mxu0 0.0
    %1183 = vmatpush1.msra.mxu0 0.0
    %1184 = vmatprep.subr.mxu0 0.0
    %1185 = vmatpush1.msra.mxu0 0.0
    %1186 = vmatprep.subr.mxu0 0.0
    %1187 = vmatpush1.msra.mxu0 0.0
    %1188 = vmatprep.subr.mxu0 0.0
    %1189 = vmatpush1.msra.mxu0 0.0
    %1190 = vmatprep.subr.mxu0 0.0
    %1191 = vmatpush1.msra.mxu0 0.0
    %1192 = vmatprep.subr.mxu0 0.0
    %1193 = vmatpush1.msra.mxu0 0.0
    %1194 = vmatprep.subr.mxu0 0.0
    %1195 = vmatpush1.msra.mxu0 0.0
    %1196 = vmatprep.subr.mxu0 0.0
    %1197 = vmatpush1.msra.mxu0 0.0
    %1198 = vmatprep.subr.mxu0 0.0
    %1199 = vmatpush1.msra.mxu0 0.0
    %1200 = vmatprep.subr.mxu0 0.0
    %1201 = vmatpush1.msra.mxu0 0.0
    %1202 = vmatprep.subr.mxu0 0.0
    %1203 = vmatpush1.msra.mxu0 0.0
    %1204 = vmatprep.subr.mxu0 0.0
    %1205 = vmatpush1.msra.mxu0 0.0
    %1206 = vmatprep.subr.mxu0 0.0
    %1207 = vmatpush1.msra.mxu0 0.0
    %1208 = vmatprep.subr.mxu0 0.0
    %1209 = vmatpush1.msra.mxu0 0.0
    %1210 = vmatprep.subr.mxu0 0.0
    %1211 = vmatpush1.msra.mxu0 0.0
    %1212 = vmatprep.subr.mxu0 0.0
    %1213 = vmatpush1.msra.mxu0 0.0
    %1214 = vmatprep.subr.mxu0 0.0
    %1215 = vmatpush1.msra.mxu0 0.0
    %1216 = vmatprep.subr.mxu0 0.0
    %1217 = vmatpush1.msra.mxu0 0.0
    %1218 = vmatprep.subr.mxu0 0.0
    %1219 = vmatpush1.msra.mxu0 0.0
    %1220 = vmatprep.subr.mxu0 0.0
    %1221 = vmatpush1.msra.mxu0 0.0
    %1222 = vmatprep.subr.mxu0 0.0
    %1223 = vmatpush1.msra.mxu0 0.0
    %1224 = vmatprep.subr.mxu0 0.0
    %1225 = vmatpush1.msra.mxu0 0.0
    %1226 = vmatprep.subr.mxu0 0.0
    %1227 = vmatpush1.msra.mxu0 0.0
    %1228 = vmatprep.mubr.f32.mxu0 0.0
    %1229 = vmatmul.mubr.f32.gmra.mrb[0].mxu0 %v1162
    %v1230 = vpop.f32.mrb[0].mxu0
    %v1231 = vadd.f32 0.0, %v1230
    %v1232 = vpop.f32.mrb[0].mxu0
    %1233 = vdwg.mxu0
    %v1234 = vadd.f32 %v1160, %v1231
    %v1235 = vmul.f32 %v1234, %v157
    %v1236 = vxor.u32 %v1235, 2147483648
    %v1237 = vmul.f32 %v1236, 1.442695
    %v1238 = vpow.pop %v1237
    %v1239 = vadd.f32 %v1238, 1.0
    %v1240 = vrcp.pop %v1239
    %v1241 = vmul.f32 1.0, %v1240
    %v1242 = vmul.f32 %v1241, 2.0
    %v1243 = vsub.f32 %v1242, 1.0
    %1245 = vrot.lane.b32.xlu0 %v1158, 32
    %v1246 = vpop.permute.xlu0 %1245
    %v1248 = vmul.f32 %v1241, %v1246
    %1250 = vrot.lane.b32.xlu0 %v1243, 64
    %v1251 = vpop.permute.xlu0 %1250
    %v1253 = vmul.f32 %v1241, %v1251
    %1255 = vrot.lane.b32.xlu0 %v1253, 32
    %v1256 = vpop.permute.xlu0 %1255
    %v1258 = vadd.f32 %v1248, %v1256
    %v1259 = vtanh.pop %v1258
    %1261 = vrot.lane.b32.xlu0 %v1259, 64
    %v1262 = vpop.permute.xlu0 %1261
    %v1264 = vmul.f32 %v1241, %v1262
    %vm1265 = vcmp.gt.s32.totalorder %v147, 7
    %v1266 = vsel %vm1265, 1, 0
    %1267 = vset.pattern.permute.xlu0 0
    %1268 = vperm.xlu0 %1267, %v1266
    %v1269 = vpop.permute.xlu0 %1268
    %vm1270 = vcmp.eq.s32.totalorder %v1269, 1
    %1271 = vrot.lane.b32.xlu0 %v1157, 96
    %v1272 = vpop.permute.xlu0 %1271
    %v1274 = vsel %vm1270, %v1264, %v1272
    %1276 = vrot.lane.b32.xlu0 %v1274, 32
    %v1277 = vpop.permute.xlu0 %1276
    %1279 = vst.msk [vmem:[#allocation2] sm:$0xff] %vm57, %v1277
    %v1280 = vsel %vm1270, %v1258, %v1246
    %1282 = vrot.lane.b32.xlu0 %v1280, 96
    %v1283 = vpop.permute.xlu0 %1282
    %1285 = vst.msk [vmem:[#allocation3] sm:$0xff] %vm57, %v1283
    %v1286 = vsel %vm1270, %v1264, 0.0
    %s1287 = scalar_lea.vmem %s0, 56
    %v1288 = vld [vmem:[%s1287] sm:$0xff]
    %1290 = vrot.lane.b32.xlu0 %v1288, 96
    %v1291 = vpop.permute.xlu0 %1290
    %v1293 = vadd.f32 %v1286, %v1291
    %1295 = vrot.lane.b32.xlu0 %v1293, 32
    %v1296 = vpop.permute.xlu0 %1295
    %s1298 = scalar_lea.vmem [#allocation5], 14
    %1299 = vst.msk [vmem:[%s1298] sm:$0x3] %vm297, %v1296
    %v1300 = vld [vmem:[#allocation2] sm:$0x3]
    %1301 = vst.msk [vmem:[#allocation7] sm:$0x3] %vm297, %v1300
    %v1302 = vld [vmem:[#allocation3] sm:$0x3]
    %1303 = vst.msk [vmem:[#allocation9] sm:$0x3] %vm297, %v1302
    // Predicated region
    $region30: #{tpu_custom_call.1} parent=1 // pred_check
      _
    $region31: #{tpu_custom_call.1} parent=1 // pred_check_branch
      %1305 = sbr.rel (0) target = $region33
    $region32: #{tpu_custom_call.1} parent=1 // pred_region
      %s1307 = ssub.s32 256, 256
      %1308 = vsyncadd [#allocation6], %s1307
      %s1309 = sshll.u32 [#allocation5], 4
      %s1310 = int_to_ptr.vmem [resolvable:$true] %s1309
      %1315 = dma.vmem_to_hbm [thread:$0]  %s1310, 256, %s7, [#allocation6], 32, 32, 2
    $region33: #{tpu_custom_call.1} parent=1 // pred_fallthru
      _
    // Predicated region
    $region34: #{tpu_custom_call.1} parent=1 // pred_check
      _
    $region35: #{tpu_custom_call.1} parent=1 // pred_check_branch
      %1317 = sbr.rel (0) target = $region37
    $region36: #{tpu_custom_call.1} parent=1 // pred_region
      %s1319 = ssub.s32 32, 32
      %1320 = vsyncadd [#allocation8], %s1319
      %s1322 = sshll.u32 [#allocation7], 4
      %s1323 = int_to_ptr.vmem [resolvable:$true] %s1322
      %1325 = dma.vmem_to_hbm [thread:$0]  %s1323, 32, %s8, [#allocation8]
    $region37: #{tpu_custom_call.1} parent=1 // pred_fallthru
      _
    // Predicated region
    $region38: #{tpu_custom_call.1} parent=1 // pred_check
      _
    $region39: #{tpu_custom_call.1} parent=1 // pred_check_branch
      %1327 = sbr.rel (0) target = $region41
    $region40: #{tpu_custom_call.1} parent=1 // pred_region
      %s1329 = ssub.s32 32, 32
      %1330 = vsyncadd [#allocation8], %s1329
      %s1332 = sshll.u32 [#allocation9], 4
      %s1333 = int_to_ptr.vmem [resolvable:$true] %s1332
      %1335 = dma.vmem_to_hbm [thread:$0]  %s1333, 32, %s9, [#allocation8]
    $region41: #{tpu_custom_call.1} parent=1 // pred_fallthru
      _
    // Predicated region
    $region42: #{tpu_custom_call.1} parent=1 // pred_check
      _
    $region43: #{tpu_custom_call.1} parent=1 // pred_check_branch
      %1337 = sbr.rel (0) target = $region45
    $region44: #{tpu_custom_call.1} parent=1 // pred_region
      %1338 = dma.done [#allocation6], 256
    $region45: #{tpu_custom_call.1} parent=1 // pred_fallthru
      _
    // Predicated region
    $region46: #{tpu_custom_call.1} parent=1 // pred_check
      _
    $region47: #{tpu_custom_call.1} parent=1 // pred_check_branch
      %1340 = sbr.rel (0) target = $region49
    $region48: #{tpu_custom_call.1} parent=1 // pred_region
      %1341 = dma.done [#allocation8], 32
    $region49: #{tpu_custom_call.1} parent=1 // pred_fallthru
      _
    // Predicated region
    $region50: #{tpu_custom_call.1} parent=1 // pred_check
      _
    $region51: #{tpu_custom_call.1} parent=1 // pred_check_branch
      %1343 = sbr.rel (0) target = $region53
    $region52: #{tpu_custom_call.1} parent=1 // pred_region
      %1344 = dma.done [#allocation8], 32
    $region53: #{tpu_custom_call.1} parent=1 // pred_fallthru
      _
    %1345 = vsyncpa [#allocation6], 1
    %1346 = vsyncpa [#allocation8], 1

</llo_original>
